<compile_context>
chip_gen: v5e
topology: v5e:2x2
jax: 0.10.0
libtpu: 0.0.40
codegen_flags: <defaults>
</compile_context>

<pallas_src>
import functools
import numpy as np
import jax
import jax.numpy as jnp
from jax import lax
from jax.experimental import pallas as pl
from jax.experimental.pallas import tpu as pltpu


# ---------------------------------------------------------------------------
# Pallas kernel
# ---------------------------------------------------------------------------
def _embed_kernel(ids_ref, tbl_ref, out_ref, acc_ref):
    """One grid step: gather TOKEN_BLOCK embedding rows from one vocab chunk.

    ids_ref : (TB, 1) int32  -- token ids for this block (VMEM)
    tbl_ref : (VC, E)        -- current vocab chunk of the table (VMEM)
    out_ref : (TB, E)        -- output block
    acc_ref : (TB, E) f32    -- accumulator across vocab chunks
    """
    v = pl.program_id(1)

    @pl.when(v == 0)
    def _():
        acc_ref[...] = jnp.zeros_like(acc_ref)

    ids = ids_ref[...]                         # (TB, 1) int32
    tb = ids.shape[0]
    vc = tbl_ref.shape[0]

    # One-hot over this vocab chunk: ids not belonging to the chunk produce an
    # all-zero row (they are picked up by the chunk that owns them).
    local = ids - v * vc                       # (TB, 1)
    col = lax.broadcasted_iota(jnp.int32, (tb, vc), 1)
    onehot = (col == local).astype(tbl_ref.dtype)   # (TB, VC)

    # MXU gather: exactly one 1.0 per in-chunk row selects the table row.
    acc_ref[...] += jnp.dot(
        onehot, tbl_ref[...],
        precision=lax.Precision.HIGHEST,
        preferred_element_type=jnp.float32)

    @pl.when(v == pl.num_programs(1) - 1)
    def _():
        out_ref[...] = acc_ref[...].astype(out_ref.dtype)


# ---------------------------------------------------------------------------
# Wrapper
# ---------------------------------------------------------------------------
def _round_up(x, m):
    return ((x + m - 1) // m) * m


def embedding_lookup(input_ids, weight, *, token_block=256, vocab_chunk=2048):
    """Pallas equivalent of nn.Embedding: weight[input_ids] -> (..., E)."""
    ids_shape = input_ids.shape
    vocab, emb = weight.shape
    n = int(np.prod(ids_shape)) if ids_shape else 1
    ids = input_ids.reshape(n).astype(jnp.int32)

    # Sublane minimum per dtype (f32 -> 8, bf16 -> 16, int8 -> 32): keeps the
    # output store unmasked on every generation.
    itemsize = jnp.dtype(weight.dtype).itemsize
    sub_min = max(8, 32 // itemsize)

    tb = max(int(token_block), sub_min)
    tb = min(tb, _round_up(max(n, 1), sub_min))
    tb = _round_up(tb, sub_min)
    n_blocks = -(-n // tb)
    n_pad = n_blocks * tb
    if n_pad != n:
        ids = jnp.pad(ids, (0, n_pad - n))     # pad with row 0; rows dropped below
    ids2d = ids.reshape(n_pad, 1)              # (TB, 1) blocks: ids already row-major

    # Vocab chunking: single resident chunk when the table is small, otherwise an
    # "arbitrary" reduction axis over zero-padded chunks.
    vc = max(int(vocab_chunk), sub_min)
    vc = min(vc, _round_up(vocab, sub_min))
    vc = _round_up(vc, sub_min)
    n_vchunks = -(-vocab // vc)
    v_pad = n_vchunks * vc
    w = jnp.pad(weight, ((0, v_pad - vocab), (0, 0))) if v_pad != vocab else weight

    out = pl.pallas_call(
        _embed_kernel,
        out_shape=jax.ShapeDtypeStruct((n_pad, emb), weight.dtype),
        grid_spec=pltpu.PrefetchScalarGridSpec(
            num_scalar_prefetch=0,
            grid=(n_blocks, n_vchunks),
            in_specs=[
                pl.BlockSpec((tb, 1), lambda i, v: (i, 0)),     # token ids
                pl.BlockSpec((vc, emb), lambda i, v: (v, 0)),   # table chunk
            ],
            out_specs=pl.BlockSpec((tb, emb), lambda i, v: (i, 0)),
            scratch_shapes=[pltpu.VMEM((tb, emb), jnp.float32)],
        ),
        compiler_params=pltpu.CompilerParams(
            dimension_semantics=("parallel", "arbitrary"),
            vmem_limit_bytes=48 * 1024 * 1024,
        ),
    )(ids2d, w)

    if n_pad != n:
        out = out[:n]
    return out.reshape(*ids_shape, emb)


def embedding_layer_forward(input_ids, weight, attention_mask=None):
    """Matches EmbeddingLayer.forward for embedding_type='word2vec'."""
    del attention_mask  # unused in the word2vec path (same as the PyTorch module)
    return embedding_lookup(input_ids, weight)


# ---------------------------------------------------------------------------
if __name__ == "__main__":
    key = jax.random.PRNGKey(0)

    # Small demo matching the module: batch=2, seq=8, vocab=512, emb=128.
    B, T = 2, 8
    VOCAB, EMB = 512, 128
    k_w, k_ids, k_w2, k_ids2 = jax.random.split(key, 4)
    weight = jax.random.normal(k_w, (VOCAB, EMB), jnp.float32)
    input_ids = jax.random.randint(k_ids, (B, T), 0, VOCAB, dtype=jnp.int32)

    out = embedding_layer_forward(input_ids, weight)
    jax.block_until_ready(out)
    ref = np.asarray(weight)[np.asarray(input_ids)]
    assert out.shape == (B, T, EMB)
    np.testing.assert_allclose(np.asarray(out), ref, rtol=1e-6, atol=1e-6)

    # Second check exercising multiple token blocks and multiple vocab chunks.
    B2, T2, VOCAB2 = 4, 512, 4096
    weight2 = jax.random.normal(k_w2, (VOCAB2, EMB), jnp.float32)
    input_ids2 = jax.random.randint(k_ids2, (B2, T2), 0, VOCAB2, dtype=jnp.int32)
    out2 = embedding_layer_forward(input_ids2, weight2)
    jax.block_until_ready(out2)
    ref2 = np.asarray(weight2)[np.asarray(input_ids2)]
    assert out2.shape == (B2, T2, EMB)
    np.testing.assert_allclose(np.asarray(out2), ref2, rtol=1e-6, atol=1e-6)

    print("KERNEL_OK")
</pallas_src>

<mosaic_0001>
module attributes {stable_mosaic.version = 11 : i64} {
  func.func @_embed_kernel(%arg0: i32, %arg1: i32, %arg2: memref<16x1xi32, #tpu.memory_space<vmem>>, %arg3: memref<512x128xf32, #tpu.memory_space<vmem>>, %arg4: memref<16x128xf32, #tpu.memory_space<vmem>>, %arg5: memref<16x128xf32, #tpu.memory_space<vmem>>) attributes {dimension_semantics = [#tpu.dimension_semantics<parallel>, #tpu.dimension_semantics<arbitrary>], iteration_bounds = array<i64: 1, 1>, scalar_prefetch = 0 : i64, scratch_operands = 1 : i64, tpu.core_type = #tpu.core_type<tc>, window_params = [{transform_indices = @transform_0, window_bounds = array<i64: 16, 1>}, {transform_indices = @transform_1, window_bounds = array<i64: 512, 128>}, {transform_indices = @transform_2, window_bounds = array<i64: 16, 128>}]} {
    %c0_i32 = arith.constant 0 : i32
    %0 = arith.cmpi eq, %arg1, %c0_i32 : i32
    %1 = arith.extui %0 : i1 to i32
    %c0_i32_0 = arith.constant 0 : i32
    %2 = arith.cmpi ne, %1, %c0_i32_0 : i32
    scf.if %2 {
      %cst_10 = arith.constant 0.000000e+00 : f32
      %20 = vector.broadcast %cst_10 : f32 to vector<16x128xf32>
      %c0_11 = arith.constant 0 : index
      %c0_12 = arith.constant 0 : index
      %21 = vector.load %arg5[%c0_11, %c0_12] : memref<16x128xf32, #tpu.memory_space<vmem>>, vector<16x128xf32>
      tpu.vector_store %arg5[%c0_11, %c0_12], %20 {strides = array<i32>} : memref<16x128xf32, #tpu.memory_space<vmem>>, vector<16x128xf32>,
    } else {
    }
    %c0 = arith.constant 0 : index
    %c0_1 = arith.constant 0 : index
    %3 = vector.load %arg2[%c0, %c0_1] : memref<16x1xi32, #tpu.memory_space<vmem>>, vector<16x1xi32>
    %c512_i32 = arith.constant 512 : i32
    %4 = arith.muli %arg1, %c512_i32 : i32
    %5 = vector.broadcast %4 : i32 to vector<16x1xi32>
    %6 = arith.subi %3, %5 : vector<16x1xi32>
    %7 = tpu.iota {dimensions = array<i32: 1>} : vector<16x512xi32>
    %8 = vector.broadcast %6 : vector<16x1xi32> to vector<16x512xi32>
    %9 = arith.cmpi eq, %7, %8 : vector<16x512xi32>
    %10 = arith.extui %9 : vector<16x512xi1> to vector<16x512xi32>
    %11 = arith.sitofp %10 : vector<16x512xi32> to vector<16x512xf32>
    %c0_2 = arith.constant 0 : index
    %c0_3 = arith.constant 0 : index
    %12 = vector.load %arg5[%c0_2, %c0_3] : memref<16x128xf32, #tpu.memory_space<vmem>>, vector<16x128xf32>
    %c0_4 = arith.constant 0 : index
    %c0_5 = arith.constant 0 : index
    %13 = vector.load %arg3[%c0_4, %c0_5] : memref<512x128xf32, #tpu.memory_space<vmem>>, vector<512x128xf32>
    %cst = arith.constant dense<0.000000e+00> : vector<16x128xf32>
    %14 = tpu.matmul %11, %13, %cst {dimension_numbers = #tpu.dot_dimension_numbers<[1], [0], [0], [1], [0, 0, 1, 1], [], []>, precision = #tpu.contract_precision<fp32>} : vector<16x512xf32>, vector<512x128xf32>, vector<16x128xf32> -> vector<16x128xf32>
    %15 = arith.addf %12, %14 : vector<16x128xf32>
    %c0_6 = arith.constant 0 : index
    %c0_7 = arith.constant 0 : index
    %16 = vector.load %arg5[%c0_6, %c0_7] : memref<16x128xf32, #tpu.memory_space<vmem>>, vector<16x128xf32>
    tpu.vector_store %arg5[%c0_6, %c0_7], %15 {strides = array<i32>} : memref<16x128xf32, #tpu.memory_space<vmem>>, vector<16x128xf32>,
    %c0_i32_8 = arith.constant 0 : i32
    %17 = arith.cmpi eq, %arg1, %c0_i32_8 : i32
    %18 = arith.extui %17 : i1 to i32
    %c0_i32_9 = arith.constant 0 : i32
    %19 = arith.cmpi ne, %18, %c0_i32_9 : i32
    scf.if %19 {
      %c0_10 = arith.constant 0 : index
      %c0_11 = arith.constant 0 : index
      %20 = vector.load %arg5[%c0_10, %c0_11] : memref<16x128xf32, #tpu.memory_space<vmem>>, vector<16x128xf32>
      %c0_12 = arith.constant 0 : index
      %c0_13 = arith.constant 0 : index
      %21 = vector.load %arg4[%c0_12, %c0_13] : memref<16x128xf32, #tpu.memory_space<vmem>>, vector<16x128xf32>
      tpu.vector_store %arg4[%c0_12, %c0_13], %20 {strides = array<i32>} : memref<16x128xf32, #tpu.memory_space<vmem>>, vector<16x128xf32>,
    } else {
    }
    return
  }
  func.func @transform_0(%arg0: i32, %arg1: i32) -> (i32, i32) {
    %c0_i32 = arith.constant 0 : i32
    %c0_i32_0 = arith.constant 0 : i32
    return %arg0, %c0_i32 : i32, i32
  }
  func.func @transform_1(%arg0: i32, %arg1: i32) -> (i32, i32) {
    %c0_i32 = arith.constant 0 : i32
    %c0_i32_0 = arith.constant 0 : i32
    return %arg1, %c0_i32 : i32, i32
  }
  func.func @transform_2(%arg0: i32, %arg1: i32) -> (i32, i32) {
    %c0_i32 = arith.constant 0 : i32
    %c0_i32_0 = arith.constant 0 : i32
    return %arg0, %c0_i32 : i32, i32
  }
}

</mosaic_0001>

<llo_original>
// kernel: tpu_custom_call.1
$region0: #{tpu_custom_call.1}
  #allocation0 [shape = 'u32[]', space=smem, size = 0x4, offset = 0x4, fixed_abs, tag = 'smem constant byte address 0x4 - core index']
  #allocation1 [shape = 'u32[72,128]{1,0:T(1,128)}', space=vmem, size = 0x9000, scoped, tag = 'internal scratch']
  #allocation2 [shape = 'f32[16,128]{1,0:T(8,128)}', space=vmem, size = 0x2000, scoped, tag = 'scratch operand']
  %s0 = inlined_call_operand.vmem [shape: s32[16,1], index: 0, kind: input, shape index: {}]
  %s1 = inlined_call_operand.hbm [shape: f32[512,128], index: 1, kind: input, shape index: {}]
  %s2 = inlined_call_operand.hbm [shape: f32[16,128], index: 2, kind: output, shape index: {}]
  %s3 = sld [smem:[#allocation0]]
  $region30: #{tpu_custom_call.1} parent=0
    _
  %s5 = ssub.s32 1, %s3
  %s6 = scalar_select 0, %s5, %s3
  $region1: #{tpu_custom_call.1} parent=0
    #allocation3 [shape = 'u8[262144]{0}', space=vmem, size = 0x40000, scoped, tag = 'input window, operand 1, single buffered']
    #allocation4 [shape = 's32[1]{0}', space=sflag, size = 0x4, scoped, tag = 'scoped memory for tpu_custom_call.1']
    #allocation5 [shape = 's32[1]{0}', space=sflag, size = 0x4, scoped, tag = 'scoped memory for tpu_custom_call.1']
    #allocation6 [shape = 'u8[8192]{0}', space=vmem, size = 0x2000, scoped, tag = 'output window, operand 0, single buffered']
    %7 = vsyncpa [#allocation4], 0
    %8 = vsyncpa [#allocation5], 0
    // Predicated region
    $region2: #{tpu_custom_call.1} parent=1 // pred_check
      _
    $region3: #{tpu_custom_call.1} parent=1 // pred_check_branch
      %10 = sbr.rel (0) target = $region5
    $region4: #{tpu_custom_call.1} parent=1 // pred_region
      _
    $region5: #{tpu_custom_call.1} parent=1 // pred_fallthru
      _
    // Predicated region
    $region6: #{tpu_custom_call.1} parent=1 // pred_check
      _
    $region7: #{tpu_custom_call.1} parent=1 // pred_check_branch
      %12 = sbr.rel (0) target = $region9
    $region8: #{tpu_custom_call.1} parent=1 // pred_region
      %14 = vsyncadd [#allocation4], 0
      %s15 = sshll.u32 %s1, 4
      %s16 = int_to_ptr.hbm [resolvable:$true] %s15
      %s17 = sshll.u32 [#allocation3], 4
      %s18 = int_to_ptr.vmem [resolvable:$true] %s17
      %23 = dma.hbm_to_vmem [thread:$0]  %s16, 8192, %s18, [#allocation4], 128, 128, 8
    $region9: #{tpu_custom_call.1} parent=1 // pred_fallthru
      _
    // Predicated region
    $region10: #{tpu_custom_call.1} parent=1 // pred_check
      _
    $region11: #{tpu_custom_call.1} parent=1 // pred_check_branch
      %25 = sbr.rel (0) target = $region13
    $region12: #{tpu_custom_call.1} parent=1 // pred_region
      %27 = dma.done [#allocation4], 8192
    $region13: #{tpu_custom_call.1} parent=1 // pred_fallthru
      _
    %p28 = scmp.eq.s32.totalorder 0, 0
    // Predicated region
    $region14: #{tpu_custom_call.1} parent=1 // pred_check
      %p29 = pneg %p28
    $region15: #{tpu_custom_call.1} parent=1 // pred_check_branch
      %31 = sbr.rel (%p29) target = $region17
    $region16: #{tpu_custom_call.1} parent=1 // pred_region
      %32 = vst [vmem:[#allocation2] sm:$0xff] 0.0
      %33 = vst [vmem:[#allocation2 + $0x8] sm:$0xff] 0.0
    $region17: #{tpu_custom_call.1} parent=1 // pred_fallthru
      _
    %v34 = vld [vmem:[%s0] sm:$0xff]
    %v35 = vld [vmem:[%s0 + $0x8] sm:$0xff]
    %s36 = smul.u32 0, 512
    %v37 = vstv %s36
    %v38 = vsub.s32 %v34, %v37
    %v39 = vsub.s32 %v35, %v37
    %v40 = vlaneseq
    %v41 = vand.u32 %v40, 127
    %v42 = vadd.s32 %v41, 128
    %v43 = vadd.s32 %v41, 256
    %v44 = vadd.s32 %v41, 384
    %45 = vset.pattern.permute.xlu0 0
    %46 = vperm.xlu0 %45, %v38
    %v47 = vpop.permute.xlu0 %46
    %48 = vset.pattern.permute.xlu0 0
    %49 = vperm.xlu0 %48, %v39
    %v50 = vpop.permute.xlu0 %49
    %vm51 = vcmp.eq.s32.totalorder %v41, %v47
    %vm52 = vcmp.eq.s32.totalorder %v42, %v47
    %vm53 = vcmp.eq.s32.totalorder %v43, %v47
    %vm54 = vcmp.eq.s32.totalorder %v44, %v47
    %vm55 = vcmp.eq.s32.totalorder %v41, %v50
    %vm56 = vcmp.eq.s32.totalorder %v42, %v50
    %vm57 = vcmp.eq.s32.totalorder %v43, %v50
    %vm58 = vcmp.eq.s32.totalorder %v44, %v50
    %v59 = vsel %vm51, 1, 0
    %v60 = vsel %vm52, 1, 0
    %v61 = vsel %vm53, 1, 0
    %v62 = vsel %vm54, 1, 0
    %v63 = vsel %vm55, 1, 0
    %v64 = vsel %vm56, 1, 0
    %v65 = vsel %vm57, 1, 0
    %v66 = vsel %vm58, 1, 0
    %v67 = vcvt.s32.f32 %v59
    %v68 = vcvt.s32.f32 %v60
    %v69 = vcvt.s32.f32 %v61
    %v70 = vcvt.s32.f32 %v62
    %v71 = vcvt.s32.f32 %v63
    %v72 = vcvt.s32.f32 %v64
    %v73 = vcvt.s32.f32 %v65
    %v74 = vcvt.s32.f32 %v66
    %v75 = vld [vmem:[#allocation2] sm:$0xff]
    %v76 = vld [vmem:[#allocation2 + $0x8] sm:$0xff]
    %v77 = vld [vmem:[#allocation3] sm:$0xff]
    %v78 = vld [vmem:[#allocation3 + $0x8] sm:$0xff]
    %v79 = vld [vmem:[#allocation3 + $0x10] sm:$0xff]
    %v80 = vld [vmem:[#allocation3 + $0x18] sm:$0xff]
    %v81 = vld [vmem:[#allocation3 + $0x20] sm:$0xff]
    %v82 = vld [vmem:[#allocation3 + $0x28] sm:$0xff]
    %v83 = vld [vmem:[#allocation3 + $0x30] sm:$0xff]
    %v84 = vld [vmem:[#allocation3 + $0x38] sm:$0xff]
    %v85 = vld [vmem:[#allocation3 + $0x40] sm:$0xff]
    %v86 = vld [vmem:[#allocation3 + $0x48] sm:$0xff]
    %v87 = vld [vmem:[#allocation3 + $0x50] sm:$0xff]
    %v88 = vld [vmem:[#allocation3 + $0x58] sm:$0xff]
    %v89 = vld [vmem:[#allocation3 + $0x60] sm:$0xff]
    %v90 = vld [vmem:[#allocation3 + $0x68] sm:$0xff]
    %v91 = vld [vmem:[#allocation3 + $0x70] sm:$0xff]
    %v92 = vld [vmem:[#allocation3 + $0x78] sm:$0xff]
    %v93 = vld [vmem:[#allocation3 + $0x80] sm:$0xff]
    %v94 = vld [vmem:[#allocation3 + $0x88] sm:$0xff]
    %v95 = vld [vmem:[#allocation3 + $0x90] sm:$0xff]
    %v96 = vld [vmem:[#allocation3 + $0x98] sm:$0xff]
    %v97 = vld [vmem:[#allocation3 + $0xa0] sm:$0xff]
    %v98 = vld [vmem:[#allocation3 + $0xa8] sm:$0xff]
    %v99 = vld [vmem:[#allocation3 + $0xb0] sm:$0xff]
    %v100 = vld [vmem:[#allocation3 + $0xb8] sm:$0xff]
    %v101 = vld [vmem:[#allocation3 + $0xc0] sm:$0xff]
    %v102 = vld [vmem:[#allocation3 + $0xc8] sm:$0xff]
    %v103 = vld [vmem:[#allocation3 + $0xd0] sm:$0xff]
    %v104 = vld [vmem:[#allocation3 + $0xd8] sm:$0xff]
    %v105 = vld [vmem:[#allocation3 + $0xe0] sm:$0xff]
    %v106 = vld [vmem:[#allocation3 + $0xe8] sm:$0xff]
    %v107 = vld [vmem:[#allocation3 + $0xf0] sm:$0xff]
    %v108 = vld [vmem:[#allocation3 + $0xf8] sm:$0xff]
    %v109 = vld [vmem:[#allocation3 + $0x100] sm:$0xff]
    %v110 = vld [vmem:[#allocation3 + $0x108] sm:$0xff]
    %v111 = vld [vmem:[#allocation3 + $0x110] sm:$0xff]
    %v112 = vld [vmem:[#allocation3 + $0x118] sm:$0xff]
    %v113 = vld [vmem:[#allocation3 + $0x120] sm:$0xff]
    %v114 = vld [vmem:[#allocation3 + $0x128] sm:$0xff]
    %v115 = vld [vmem:[#allocation3 + $0x130] sm:$0xff]
    %v116 = vld [vmem:[#allocation3 + $0x138] sm:$0xff]
    %v117 = vld [vmem:[#allocation3 + $0x140] sm:$0xff]
    %v118 = vld [vmem:[#allocation3 + $0x148] sm:$0xff]
    %v119 = vld [vmem:[#allocation3 + $0x150] sm:$0xff]
    %v120 = vld [vmem:[#allocation3 + $0x158] sm:$0xff]
    %v121 = vld [vmem:[#allocation3 + $0x160] sm:$0xff]
    %v122 = vld [vmem:[#allocation3 + $0x168] sm:$0xff]
    %v123 = vld [vmem:[#allocation3 + $0x170] sm:$0xff]
    %v124 = vld [vmem:[#allocation3 + $0x178] sm:$0xff]
    %v125 = vld [vmem:[#allocation3 + $0x180] sm:$0xff]
    %v126 = vld [vmem:[#allocation3 + $0x188] sm:$0xff]
    %v127 = vld [vmem:[#allocation3 + $0x190] sm:$0xff]
    %v128 = vld [vmem:[#allocation3 + $0x198] sm:$0xff]
    %v129 = vld [vmem:[#allocation3 + $0x1a0] sm:$0xff]
    %v130 = vld [vmem:[#allocation3 + $0x1a8] sm:$0xff]
    %v131 = vld [vmem:[#allocation3 + $0x1b0] sm:$0xff]
    %v132 = vld [vmem:[#allocation3 + $0x1b8] sm:$0xff]
    %v133 = vld [vmem:[#allocation3 + $0x1c0] sm:$0xff]
    %v134 = vld [vmem:[#allocation3 + $0x1c8] sm:$0xff]
    %v135 = vld [vmem:[#allocation3 + $0x1d0] sm:$0xff]
    %v136 = vld [vmem:[#allocation3 + $0x1d8] sm:$0xff]
    %v137 = vld [vmem:[#allocation3 + $0x1e0] sm:$0xff]
    %v138 = vld [vmem:[#allocation3 + $0x1e8] sm:$0xff]
    %v139 = vld [vmem:[#allocation3 + $0x1f0] sm:$0xff]
    %v140 = vld [vmem:[#allocation3 + $0x1f8] sm:$0xff]
    %v141 = vand.u32 %v92, 4294901760
    %142 = vmatpush.msra.mxu0 %v141
    %v143 = vand.u32 %v91, 4294901760
    %144 = vmatpush.msra.mxu0 %v143
    %v145 = vand.u32 %v90, 4294901760
    %146 = vmatpush.msra.mxu0 %v145
    %v147 = vand.u32 %v89, 4294901760
    %148 = vmatpush.msra.mxu0 %v147
    %v149 = vand.u32 %v88, 4294901760
    %150 = vmatpush.msra.mxu0 %v149
    %v151 = vand.u32 %v87, 4294901760
    %152 = vmatpush.msra.mxu0 %v151
    %v153 = vand.u32 %v86, 4294901760
    %154 = vmatpush.msra.mxu0 %v153
    %v155 = vand.u32 %v85, 4294901760
    %156 = vmatpush.msra.mxu0 %v155
    %v157 = vand.u32 %v84, 4294901760
    %158 = vmatpush.msra.mxu0 %v157
    %v159 = vand.u32 %v83, 4294901760
    %160 = vmatpush.msra.mxu0 %v159
    %v161 = vand.u32 %v82, 4294901760
    %162 = vmatpush.msra.mxu0 %v161
    %v163 = vand.u32 %v81, 4294901760
    %164 = vmatpush.msra.mxu0 %v163
    %v165 = vand.u32 %v80, 4294901760
    %166 = vmatpush.msra.mxu0 %v165
    %v167 = vand.u32 %v79, 4294901760
    %168 = vmatpush.msra.mxu0 %v167
    %v169 = vand.u32 %v78, 4294901760
    %170 = vmatpush.msra.mxu0 %v169
    %v171 = vand.u32 %v77, 4294901760
    %172 = vmatpush.msra.mxu0 %v171
    %v173 = vand.u32 %v67, 4294901760
    %v174 = vsub.f32 %v67, %v173
    %v175 = vand.u32 %v174, 4294901760
    %v176 = vsub.f32 %v174, %v175
    %v177 = vand.u32 %v176, 4294901760
    %178 = vmatmul.f32.gmra.mxu0 %v177
    %v179 = vpop.f32.mrf.mxu0
    %v180 = vadd.f32 0.0, %v179
    %v181 = vand.u32 %v71, 4294901760
    %v182 = vsub.f32 %v71, %v181
    %v183 = vand.u32 %v182, 4294901760
    %v184 = vsub.f32 %v182, %v183
    %v185 = vand.u32 %v184, 4294901760
    %186 = vmatmul.f32.gmra.mxu0 %v185
    %v187 = vpop.f32.mrf.mxu0
    %v188 = vadd.f32 0.0, %v187
    %189 = vdwg.mxu0
    %v190 = vand.u32 %v92, 4294901760
    %v191 = vsub.f32 %v92, %v190
    %v192 = vand.u32 %v191, 4294901760
    %v193 = vsub.f32 %v191, %v192
    %v194 = vand.u32 %v193, 4294901760
    %195 = vmatpush.msra.mxu0 %v194
    %v196 = vand.u32 %v91, 4294901760
    %v197 = vsub.f32 %v91, %v196
    %v198 = vand.u32 %v197, 4294901760
    %v199 = vsub.f32 %v197, %v198
    %v200 = vand.u32 %v199, 4294901760
    %201 = vmatpush.msra.mxu0 %v200
    %v202 = vand.u32 %v90, 4294901760
    %v203 = vsub.f32 %v90, %v202
    %v204 = vand.u32 %v203, 4294901760
    %v205 = vsub.f32 %v203, %v204
    %v206 = vand.u32 %v205, 4294901760
    %207 = vmatpush.msra.mxu0 %v206
    %v208 = vand.u32 %v89, 4294901760
    %v209 = vsub.f32 %v89, %v208
    %v210 = vand.u32 %v209, 4294901760
    %v211 = vsub.f32 %v209, %v210
    %v212 = vand.u32 %v211, 4294901760
    %213 = vmatpush.msra.mxu0 %v212
    %v214 = vand.u32 %v88, 4294901760
    %v215 = vsub.f32 %v88, %v214
    %v216 = vand.u32 %v215, 4294901760
    %v217 = vsub.f32 %v215, %v216
    %v218 = vand.u32 %v217, 4294901760
    %219 = vmatpush.msra.mxu0 %v218
    %v220 = vand.u32 %v87, 4294901760
    %v221 = vsub.f32 %v87, %v220
    %v222 = vand.u32 %v221, 4294901760
    %v223 = vsub.f32 %v221, %v222
    %v224 = vand.u32 %v223, 4294901760
    %225 = vmatpush.msra.mxu0 %v224
    %v226 = vand.u32 %v86, 4294901760
    %v227 = vsub.f32 %v86, %v226
    %v228 = vand.u32 %v227, 4294901760
    %v229 = vsub.f32 %v227, %v228
    %v230 = vand.u32 %v229, 4294901760
    %231 = vmatpush.msra.mxu0 %v230
    %v232 = vand.u32 %v85, 4294901760
    %v233 = vsub.f32 %v85, %v232
    %v234 = vand.u32 %v233, 4294901760
    %v235 = vsub.f32 %v233, %v234
    %v236 = vand.u32 %v235, 4294901760
    %237 = vmatpush.msra.mxu0 %v236
    %v238 = vand.u32 %v84, 4294901760
    %v239 = vsub.f32 %v84, %v238
    %v240 = vand.u32 %v239, 4294901760
    %v241 = vsub.f32 %v239, %v240
    %v242 = vand.u32 %v241, 4294901760
    %243 = vmatpush.msra.mxu0 %v242
    %v244 = vand.u32 %v83, 4294901760
    %v245 = vsub.f32 %v83, %v244
    %v246 = vand.u32 %v245, 4294901760
    %v247 = vsub.f32 %v245, %v246
    %v248 = vand.u32 %v247, 4294901760
    %249 = vmatpush.msra.mxu0 %v248
    %v250 = vand.u32 %v82, 4294901760
    %v251 = vsub.f32 %v82, %v250
    %v252 = vand.u32 %v251, 4294901760
    %v253 = vsub.f32 %v251, %v252
    %v254 = vand.u32 %v253, 4294901760
    %255 = vmatpush.msra.mxu0 %v254
    %v256 = vand.u32 %v81, 4294901760
    %v257 = vsub.f32 %v81, %v256
    %v258 = vand.u32 %v257, 4294901760
    %v259 = vsub.f32 %v257, %v258
    %v260 = vand.u32 %v259, 4294901760
    %261 = vmatpush.msra.mxu0 %v260
    %v262 = vand.u32 %v80, 4294901760
    %v263 = vsub.f32 %v80, %v262
    %v264 = vand.u32 %v263, 4294901760
    %v265 = vsub.f32 %v263, %v264
    %v266 = vand.u32 %v265, 4294901760
    %267 = vmatpush.msra.mxu0 %v266
    %v268 = vand.u32 %v79, 4294901760
    %v269 = vsub.f32 %v79, %v268
    %v270 = vand.u32 %v269, 4294901760
    %v271 = vsub.f32 %v269, %v270
    %v272 = vand.u32 %v271, 4294901760
    %273 = vmatpush.msra.mxu0 %v272
    %v274 = vand.u32 %v78, 4294901760
    %v275 = vsub.f32 %v78, %v274
    %v276 = vand.u32 %v275, 4294901760
    %v277 = vsub.f32 %v275, %v276
    %v278 = vand.u32 %v277, 4294901760
    %279 = vmatpush.msra.mxu0 %v278
    %v280 = vand.u32 %v77, 4294901760
    %v281 = vsub.f32 %v77, %v280
    %v282 = vand.u32 %v281, 4294901760
    %v283 = vsub.f32 %v281, %v282
    %v284 = vand.u32 %v283, 4294901760
    %285 = vmatpush.msra.mxu0 %v284
    %v286 = vand.u32 %v67, 4294901760
    %287 = vmatmul.f32.gmra.mxu0 %v286
    %v288 = vpop.f32.mrf.mxu0
    %v289 = vadd.f32 %v180, %v288
    %v290 = vand.u32 %v71, 4294901760
    %291 = vmatmul.f32.gmra.mxu0 %v290
    %v292 = vpop.f32.mrf.mxu0
    %v293 = vadd.f32 %v188, %v292
    %294 = vdwg.mxu0
    %v295 = vand.u32 %v92, 4294901760
    %v296 = vsub.f32 %v92, %v295
    %297 = vmatpush.msra.mxu0 %v296
    %v298 = vand.u32 %v91, 4294901760
    %v299 = vsub.f32 %v91, %v298
    %300 = vmatpush.msra.mxu0 %v299
    %v301 = vand.u32 %v90, 4294901760
    %v302 = vsub.f32 %v90, %v301
    %303 = vmatpush.msra.mxu0 %v302
    %v304 = vand.u32 %v89, 4294901760
    %v305 = vsub.f32 %v89, %v304
    %306 = vmatpush.msra.mxu0 %v305
    %v307 = vand.u32 %v88, 4294901760
    %v308 = vsub.f32 %v88, %v307
    %309 = vmatpush.msra.mxu0 %v308
    %v310 = vand.u32 %v87, 4294901760
    %v311 = vsub.f32 %v87, %v310
    %312 = vmatpush.msra.mxu0 %v311
    %v313 = vand.u32 %v86, 4294901760
    %v314 = vsub.f32 %v86, %v313
    %315 = vmatpush.msra.mxu0 %v314
    %v316 = vand.u32 %v85, 4294901760
    %v317 = vsub.f32 %v85, %v316
    %318 = vmatpush.msra.mxu0 %v317
    %v319 = vand.u32 %v84, 4294901760
    %v320 = vsub.f32 %v84, %v319
    %321 = vmatpush.msra.mxu0 %v320
    %v322 = vand.u32 %v83, 4294901760
    %v323 = vsub.f32 %v83, %v322
    %324 = vmatpush.msra.mxu0 %v323
    %v325 = vand.u32 %v82, 4294901760
    %v326 = vsub.f32 %v82, %v325
    %327 = vmatpush.msra.mxu0 %v326
    %v328 = vand.u32 %v81, 4294901760
    %v329 = vsub.f32 %v81, %v328
    %330 = vmatpush.msra.mxu0 %v329
    %v331 = vand.u32 %v80, 4294901760
    %v332 = vsub.f32 %v80, %v331
    %333 = vmatpush.msra.mxu0 %v332
    %v334 = vand.u32 %v79, 4294901760
    %v335 = vsub.f32 %v79, %v334
    %336 = vmatpush.msra.mxu0 %v335
    %v337 = vand.u32 %v78, 4294901760
    %v338 = vsub.f32 %v78, %v337
    %339 = vmatpush.msra.mxu0 %v338
    %v340 = vand.u32 %v77, 4294901760
    %v341 = vsub.f32 %v77, %v340
    %342 = vmatpush.msra.mxu0 %v341
    %v343 = vand.u32 %v67, 4294901760
    %v344 = vsub.f32 %v67, %v343
    %345 = vmatmul.f32.gmra.mxu0 %v344
    %v346 = vpop.f32.mrf.mxu0
    %v347 = vadd.f32 %v289, %v346
    %v348 = vand.u32 %v71, 4294901760
    %v349 = vsub.f32 %v71, %v348
    %350 = vmatmul.f32.gmra.mxu0 %v349
    %v351 = vpop.f32.mrf.mxu0
    %v352 = vadd.f32 %v293, %v351
    %353 = vdwg.mxu0
    %v354 = vand.u32 %v92, 4294901760
    %355 = vmatpush.msra.mxu0 %v354
    %v356 = vand.u32 %v91, 4294901760
    %357 = vmatpush.msra.mxu0 %v356
    %v358 = vand.u32 %v90, 4294901760
    %359 = vmatpush.msra.mxu0 %v358
    %v360 = vand.u32 %v89, 4294901760
    %361 = vmatpush.msra.mxu0 %v360
    %v362 = vand.u32 %v88, 4294901760
    %363 = vmatpush.msra.mxu0 %v362
    %v364 = vand.u32 %v87, 4294901760
    %365 = vmatpush.msra.mxu0 %v364
    %v366 = vand.u32 %v86, 4294901760
    %367 = vmatpush.msra.mxu0 %v366
    %v368 = vand.u32 %v85, 4294901760
    %369 = vmatpush.msra.mxu0 %v368
    %v370 = vand.u32 %v84, 4294901760
    %371 = vmatpush.msra.mxu0 %v370
    %v372 = vand.u32 %v83, 4294901760
    %373 = vmatpush.msra.mxu0 %v372
    %v374 = vand.u32 %v82, 4294901760
    %375 = vmatpush.msra.mxu0 %v374
    %v376 = vand.u32 %v81, 4294901760
    %377 = vmatpush.msra.mxu0 %v376
    %v378 = vand.u32 %v80, 4294901760
    %379 = vmatpush.msra.mxu0 %v378
    %v380 = vand.u32 %v79, 4294901760
    %381 = vmatpush.msra.mxu0 %v380
    %v382 = vand.u32 %v78, 4294901760
    %383 = vmatpush.msra.mxu0 %v382
    %v384 = vand.u32 %v77, 4294901760
    %385 = vmatpush.msra.mxu0 %v384
    %v386 = vand.u32 %v67, 4294901760
    %v387 = vsub.f32 %v67, %v386
    %v388 = vand.u32 %v387, 4294901760
    %389 = vmatmul.f32.gmra.mxu0 %v388
    %v390 = vpop.f32.mrf.mxu0
    %v391 = vadd.f32 %v347, %v390
    %v392 = vand.u32 %v71, 4294901760
    %v393 = vsub.f32 %v71, %v392
    %v394 = vand.u32 %v393, 4294901760
    %395 = vmatmul.f32.gmra.mxu0 %v394
    %v396 = vpop.f32.mrf.mxu0
    %v397 = vadd.f32 %v352, %v396
    %398 = vdwg.mxu0
    %v399 = vand.u32 %v92, 4294901760
    %v400 = vsub.f32 %v92, %v399
    %v401 = vand.u32 %v400, 4294901760
    %402 = vmatpush.msra.mxu0 %v401
    %v403 = vand.u32 %v91, 4294901760
    %v404 = vsub.f32 %v91, %v403
    %v405 = vand.u32 %v404, 4294901760
    %406 = vmatpush.msra.mxu0 %v405
    %v407 = vand.u32 %v90, 4294901760
    %v408 = vsub.f32 %v90, %v407
    %v409 = vand.u32 %v408, 4294901760
    %410 = vmatpush.msra.mxu0 %v409
    %v411 = vand.u32 %v89, 4294901760
    %v412 = vsub.f32 %v89, %v411
    %v413 = vand.u32 %v412, 4294901760
    %414 = vmatpush.msra.mxu0 %v413
    %v415 = vand.u32 %v88, 4294901760
    %v416 = vsub.f32 %v88, %v415
    %v417 = vand.u32 %v416, 4294901760
    %418 = vmatpush.msra.mxu0 %v417
    %v419 = vand.u32 %v87, 4294901760
    %v420 = vsub.f32 %v87, %v419
    %v421 = vand.u32 %v420, 4294901760
    %422 = vmatpush.msra.mxu0 %v421
    %v423 = vand.u32 %v86, 4294901760
    %v424 = vsub.f32 %v86, %v423
    %v425 = vand.u32 %v424, 4294901760
    %426 = vmatpush.msra.mxu0 %v425
    %v427 = vand.u32 %v85, 4294901760
    %v428 = vsub.f32 %v85, %v427
    %v429 = vand.u32 %v428, 4294901760
    %430 = vmatpush.msra.mxu0 %v429
    %v431 = vand.u32 %v84, 4294901760
    %v432 = vsub.f32 %v84, %v431
    %v433 = vand.u32 %v432, 4294901760
    %434 = vmatpush.msra.mxu0 %v433
    %v435 = vand.u32 %v83, 4294901760
    %v436 = vsub.f32 %v83, %v435
    %v437 = vand.u32 %v436, 4294901760
    %438 = vmatpush.msra.mxu0 %v437
    %v439 = vand.u32 %v82, 4294901760
    %v440 = vsub.f32 %v82, %v439
    %v441 = vand.u32 %v440, 4294901760
    %442 = vmatpush.msra.mxu0 %v441
    %v443 = vand.u32 %v81, 4294901760
    %v444 = vsub.f32 %v81, %v443
    %v445 = vand.u32 %v444, 4294901760
    %446 = vmatpush.msra.mxu0 %v445
    %v447 = vand.u32 %v80, 4294901760
    %v448 = vsub.f32 %v80, %v447
    %v449 = vand.u32 %v448, 4294901760
    %450 = vmatpush.msra.mxu0 %v449
    %v451 = vand.u32 %v79, 4294901760
    %v452 = vsub.f32 %v79, %v451
    %v453 = vand.u32 %v452, 4294901760
    %454 = vmatpush.msra.mxu0 %v453
    %v455 = vand.u32 %v78, 4294901760
    %v456 = vsub.f32 %v78, %v455
    %v457 = vand.u32 %v456, 4294901760
    %458 = vmatpush.msra.mxu0 %v457
    %v459 = vand.u32 %v77, 4294901760
    %v460 = vsub.f32 %v77, %v459
    %v461 = vand.u32 %v460, 4294901760
    %462 = vmatpush.msra.mxu0 %v461
    %v463 = vand.u32 %v67, 4294901760
    %464 = vmatmul.f32.gmra.mxu0 %v463
    %v465 = vpop.f32.mrf.mxu0
    %v466 = vadd.f32 %v391, %v465
    %v467 = vand.u32 %v71, 4294901760
    %468 = vmatmul.f32.gmra.mxu0 %v467
    %v469 = vpop.f32.mrf.mxu0
    %v470 = vadd.f32 %v397, %v469
    %471 = vdwg.mxu0
    %v472 = vand.u32 %v92, 4294901760
    %473 = vmatpush.msra.mxu0 %v472
    %v474 = vand.u32 %v91, 4294901760
    %475 = vmatpush.msra.mxu0 %v474
    %v476 = vand.u32 %v90, 4294901760
    %477 = vmatpush.msra.mxu0 %v476
    %v478 = vand.u32 %v89, 4294901760
    %479 = vmatpush.msra.mxu0 %v478
    %v480 = vand.u32 %v88, 4294901760
    %481 = vmatpush.msra.mxu0 %v480
    %v482 = vand.u32 %v87, 4294901760
    %483 = vmatpush.msra.mxu0 %v482
    %v484 = vand.u32 %v86, 4294901760
    %485 = vmatpush.msra.mxu0 %v484
    %v486 = vand.u32 %v85, 4294901760
    %487 = vmatpush.msra.mxu0 %v486
    %v488 = vand.u32 %v84, 4294901760
    %489 = vmatpush.msra.mxu0 %v488
    %v490 = vand.u32 %v83, 4294901760
    %491 = vmatpush.msra.mxu0 %v490
    %v492 = vand.u32 %v82, 4294901760
    %493 = vmatpush.msra.mxu0 %v492
    %v494 = vand.u32 %v81, 4294901760
    %495 = vmatpush.msra.mxu0 %v494
    %v496 = vand.u32 %v80, 4294901760
    %497 = vmatpush.msra.mxu0 %v496
    %v498 = vand.u32 %v79, 4294901760
    %499 = vmatpush.msra.mxu0 %v498
    %v500 = vand.u32 %v78, 4294901760
    %501 = vmatpush.msra.mxu0 %v500
    %v502 = vand.u32 %v77, 4294901760
    %503 = vmatpush.msra.mxu0 %v502
    %v504 = vand.u32 %v67, 4294901760
    %505 = vmatmul.f32.gmra.mxu0 %v504
    %v506 = vpop.f32.mrf.mxu0
    %v507 = vadd.f32 %v466, %v506
    %v508 = vand.u32 %v71, 4294901760
    %509 = vmatmul.f32.gmra.mxu0 %v508
    %v510 = vpop.f32.mrf.mxu0
    %v511 = vadd.f32 %v470, %v510
    %512 = vdwg.mxu0
    %v513 = vand.u32 %v108, 4294901760
    %514 = vmatpush.msra.mxu0 %v513
    %v515 = vand.u32 %v107, 4294901760
    %516 = vmatpush.msra.mxu0 %v515
    %v517 = vand.u32 %v106, 4294901760
    %518 = vmatpush.msra.mxu0 %v517
    %v519 = vand.u32 %v105, 4294901760
    %520 = vmatpush.msra.mxu0 %v519
    %v521 = vand.u32 %v104, 4294901760
    %522 = vmatpush.msra.mxu0 %v521
    %v523 = vand.u32 %v103, 4294901760
    %524 = vmatpush.msra.mxu0 %v523
    %v525 = vand.u32 %v102, 4294901760
    %526 = vmatpush.msra.mxu0 %v525
    %v527 = vand.u32 %v101, 4294901760
    %528 = vmatpush.msra.mxu0 %v527
    %v529 = vand.u32 %v100, 4294901760
    %530 = vmatpush.msra.mxu0 %v529
    %v531 = vand.u32 %v99, 4294901760
    %532 = vmatpush.msra.mxu0 %v531
    %v533 = vand.u32 %v98, 4294901760
    %534 = vmatpush.msra.mxu0 %v533
    %v535 = vand.u32 %v97, 4294901760
    %536 = vmatpush.msra.mxu0 %v535
    %v537 = vand.u32 %v96, 4294901760
    %538 = vmatpush.msra.mxu0 %v537
    %v539 = vand.u32 %v95, 4294901760
    %540 = vmatpush.msra.mxu0 %v539
    %v541 = vand.u32 %v94, 4294901760
    %542 = vmatpush.msra.mxu0 %v541
    %v543 = vand.u32 %v93, 4294901760
    %544 = vmatpush.msra.mxu0 %v543
    %v545 = vand.u32 %v68, 4294901760
    %v546 = vsub.f32 %v68, %v545
    %v547 = vand.u32 %v546, 4294901760
    %v548 = vsub.f32 %v546, %v547
    %v549 = vand.u32 %v548, 4294901760
    %550 = vmatmul.f32.gmra.mxu0 %v549
    %v551 = vpop.f32.mrf.mxu0
    %v552 = vadd.f32 %v507, %v551
    %v553 = vand.u32 %v72, 4294901760
    %v554 = vsub.f32 %v72, %v553
    %v555 = vand.u32 %v554, 4294901760
    %v556 = vsub.f32 %v554, %v555
    %v557 = vand.u32 %v556, 4294901760
    %558 = vmatmul.f32.gmra.mxu0 %v557
    %v559 = vpop.f32.mrf.mxu0
    %v560 = vadd.f32 %v511, %v559
    %561 = vdwg.mxu0
    %v562 = vand.u32 %v108, 4294901760
    %v563 = vsub.f32 %v108, %v562
    %v564 = vand.u32 %v563, 4294901760
    %v565 = vsub.f32 %v563, %v564
    %v566 = vand.u32 %v565, 4294901760
    %567 = vmatpush.msra.mxu0 %v566
    %v568 = vand.u32 %v107, 4294901760
    %v569 = vsub.f32 %v107, %v568
    %v570 = vand.u32 %v569, 4294901760
    %v571 = vsub.f32 %v569, %v570
    %v572 = vand.u32 %v571, 4294901760
    %573 = vmatpush.msra.mxu0 %v572
    %v574 = vand.u32 %v106, 4294901760
    %v575 = vsub.f32 %v106, %v574
    %v576 = vand.u32 %v575, 4294901760
    %v577 = vsub.f32 %v575, %v576
    %v578 = vand.u32 %v577, 4294901760
    %579 = vmatpush.msra.mxu0 %v578
    %v580 = vand.u32 %v105, 4294901760
    %v581 = vsub.f32 %v105, %v580
    %v582 = vand.u32 %v581, 4294901760
    %v583 = vsub.f32 %v581, %v582
    %v584 = vand.u32 %v583, 4294901760
    %585 = vmatpush.msra.mxu0 %v584
    %v586 = vand.u32 %v104, 4294901760
    %v587 = vsub.f32 %v104, %v586
    %v588 = vand.u32 %v587, 4294901760
    %v589 = vsub.f32 %v587, %v588
    %v590 = vand.u32 %v589, 4294901760
    %591 = vmatpush.msra.mxu0 %v590
    %v592 = vand.u32 %v103, 4294901760
    %v593 = vsub.f32 %v103, %v592
    %v594 = vand.u32 %v593, 4294901760
    %v595 = vsub.f32 %v593, %v594
    %v596 = vand.u32 %v595, 4294901760
    %597 = vmatpush.msra.mxu0 %v596
    %v598 = vand.u32 %v102, 4294901760
    %v599 = vsub.f32 %v102, %v598
    %v600 = vand.u32 %v599, 4294901760
    %v601 = vsub.f32 %v599, %v600
    %v602 = vand.u32 %v601, 4294901760
    %603 = vmatpush.msra.mxu0 %v602
    %v604 = vand.u32 %v101, 4294901760
    %v605 = vsub.f32 %v101, %v604
    %v606 = vand.u32 %v605, 4294901760
    %v607 = vsub.f32 %v605, %v606
    %v608 = vand.u32 %v607, 4294901760
    %609 = vmatpush.msra.mxu0 %v608
    %v610 = vand.u32 %v100, 4294901760
    %v611 = vsub.f32 %v100, %v610
    %v612 = vand.u32 %v611, 4294901760
    %v613 = vsub.f32 %v611, %v612
    %v614 = vand.u32 %v613, 4294901760
    %615 = vmatpush.msra.mxu0 %v614
    %v616 = vand.u32 %v99, 4294901760
    %v617 = vsub.f32 %v99, %v616
    %v618 = vand.u32 %v617, 4294901760
    %v619 = vsub.f32 %v617, %v618
    %v620 = vand.u32 %v619, 4294901760
    %621 = vmatpush.msra.mxu0 %v620
    %v622 = vand.u32 %v98, 4294901760
    %v623 = vsub.f32 %v98, %v622
    %v624 = vand.u32 %v623, 4294901760
    %v625 = vsub.f32 %v623, %v624
    %v626 = vand.u32 %v625, 4294901760
    %627 = vmatpush.msra.mxu0 %v626
    %v628 = vand.u32 %v97, 4294901760
    %v629 = vsub.f32 %v97, %v628
    %v630 = vand.u32 %v629, 4294901760
    %v631 = vsub.f32 %v629, %v630
    %v632 = vand.u32 %v631, 4294901760
    %633 = vmatpush.msra.mxu0 %v632
    %v634 = vand.u32 %v96, 4294901760
    %v635 = vsub.f32 %v96, %v634
    %v636 = vand.u32 %v635, 4294901760
    %v637 = vsub.f32 %v635, %v636
    %v638 = vand.u32 %v637, 4294901760
    %639 = vmatpush.msra.mxu0 %v638
    %v640 = vand.u32 %v95, 4294901760
    %v641 = vsub.f32 %v95, %v640
    %v642 = vand.u32 %v641, 4294901760
    %v643 = vsub.f32 %v641, %v642
    %v644 = vand.u32 %v643, 4294901760
    %645 = vmatpush.msra.mxu0 %v644
    %v646 = vand.u32 %v94, 4294901760
    %v647 = vsub.f32 %v94, %v646
    %v648 = vand.u32 %v647, 4294901760
    %v649 = vsub.f32 %v647, %v648
    %v650 = vand.u32 %v649, 4294901760
    %651 = vmatpush.msra.mxu0 %v650
    %v652 = vand.u32 %v93, 4294901760
    %v653 = vsub.f32 %v93, %v652
    %v654 = vand.u32 %v653, 4294901760
    %v655 = vsub.f32 %v653, %v654
    %v656 = vand.u32 %v655, 4294901760
    %657 = vmatpush.msra.mxu0 %v656
    %v658 = vand.u32 %v68, 4294901760
    %659 = vmatmul.f32.gmra.mxu0 %v658
    %v660 = vpop.f32.mrf.mxu0
    %v661 = vadd.f32 %v552, %v660
    %v662 = vand.u32 %v72, 4294901760
    %663 = vmatmul.f32.gmra.mxu0 %v662
    %v664 = vpop.f32.mrf.mxu0
    %v665 = vadd.f32 %v560, %v664
    %666 = vdwg.mxu0
    %v667 = vand.u32 %v108, 4294901760
    %v668 = vsub.f32 %v108, %v667
    %669 = vmatpush.msra.mxu0 %v668
    %v670 = vand.u32 %v107, 4294901760
    %v671 = vsub.f32 %v107, %v670
    %672 = vmatpush.msra.mxu0 %v671
    %v673 = vand.u32 %v106, 4294901760
    %v674 = vsub.f32 %v106, %v673
    %675 = vmatpush.msra.mxu0 %v674
    %v676 = vand.u32 %v105, 4294901760
    %v677 = vsub.f32 %v105, %v676
    %678 = vmatpush.msra.mxu0 %v677
    %v679 = vand.u32 %v104, 4294901760
    %v680 = vsub.f32 %v104, %v679
    %681 = vmatpush.msra.mxu0 %v680
    %v682 = vand.u32 %v103, 4294901760
    %v683 = vsub.f32 %v103, %v682
    %684 = vmatpush.msra.mxu0 %v683
    %v685 = vand.u32 %v102, 4294901760
    %v686 = vsub.f32 %v102, %v685
    %687 = vmatpush.msra.mxu0 %v686
    %v688 = vand.u32 %v101, 4294901760
    %v689 = vsub.f32 %v101, %v688
    %690 = vmatpush.msra.mxu0 %v689
    %v691 = vand.u32 %v100, 4294901760
    %v692 = vsub.f32 %v100, %v691
    %693 = vmatpush.msra.mxu0 %v692
    %v694 = vand.u32 %v99, 4294901760
    %v695 = vsub.f32 %v99, %v694
    %696 = vmatpush.msra.mxu0 %v695
    %v697 = vand.u32 %v98, 4294901760
    %v698 = vsub.f32 %v98, %v697
    %699 = vmatpush.msra.mxu0 %v698
    %v700 = vand.u32 %v97, 4294901760
    %v701 = vsub.f32 %v97, %v700
    %702 = vmatpush.msra.mxu0 %v701
    %v703 = vand.u32 %v96, 4294901760
    %v704 = vsub.f32 %v96, %v703
    %705 = vmatpush.msra.mxu0 %v704
    %v706 = vand.u32 %v95, 4294901760
    %v707 = vsub.f32 %v95, %v706
    %708 = vmatpush.msra.mxu0 %v707
    %v709 = vand.u32 %v94, 4294901760
    %v710 = vsub.f32 %v94, %v709
    %711 = vmatpush.msra.mxu0 %v710
    %v712 = vand.u32 %v93, 4294901760
    %v713 = vsub.f32 %v93, %v712
    %714 = vmatpush.msra.mxu0 %v713
    %v715 = vand.u32 %v68, 4294901760
    %v716 = vsub.f32 %v68, %v715
    %717 = vmatmul.f32.gmra.mxu0 %v716
    %v718 = vpop.f32.mrf.mxu0
    %v719 = vadd.f32 %v661, %v718
    %v720 = vand.u32 %v72, 4294901760
    %v721 = vsub.f32 %v72, %v720
    %722 = vmatmul.f32.gmra.mxu0 %v721
    %v723 = vpop.f32.mrf.mxu0
    %v724 = vadd.f32 %v665, %v723
    %725 = vdwg.mxu0
    %v726 = vand.u32 %v108, 4294901760
    %727 = vmatpush.msra.mxu0 %v726
    %v728 = vand.u32 %v107, 4294901760
    %729 = vmatpush.msra.mxu0 %v728
    %v730 = vand.u32 %v106, 4294901760
    %731 = vmatpush.msra.mxu0 %v730
    %v732 = vand.u32 %v105, 4294901760
    %733 = vmatpush.msra.mxu0 %v732
    %v734 = vand.u32 %v104, 4294901760
    %735 = vmatpush.msra.mxu0 %v734
    %v736 = vand.u32 %v103, 4294901760
    %737 = vmatpush.msra.mxu0 %v736
    %v738 = vand.u32 %v102, 4294901760
    %739 = vmatpush.msra.mxu0 %v738
    %v740 = vand.u32 %v101, 4294901760
    %741 = vmatpush.msra.mxu0 %v740
    %v742 = vand.u32 %v100, 4294901760
    %743 = vmatpush.msra.mxu0 %v742
    %v744 = vand.u32 %v99, 4294901760
    %745 = vmatpush.msra.mxu0 %v744
    %v746 = vand.u32 %v98, 4294901760
    %747 = vmatpush.msra.mxu0 %v746
    %v748 = vand.u32 %v97, 4294901760
    %749 = vmatpush.msra.mxu0 %v748
    %v750 = vand.u32 %v96, 4294901760
    %751 = vmatpush.msra.mxu0 %v750
    %v752 = vand.u32 %v95, 4294901760
    %753 = vmatpush.msra.mxu0 %v752
    %v754 = vand.u32 %v94, 4294901760
    %755 = vmatpush.msra.mxu0 %v754
    %v756 = vand.u32 %v93, 4294901760
    %757 = vmatpush.msra.mxu0 %v756
    %v758 = vand.u32 %v68, 4294901760
    %v759 = vsub.f32 %v68, %v758
    %v760 = vand.u32 %v759, 4294901760
    %761 = vmatmul.f32.gmra.mxu0 %v760
    %v762 = vpop.f32.mrf.mxu0
    %v763 = vadd.f32 %v719, %v762
    %v764 = vand.u32 %v72, 4294901760
    %v765 = vsub.f32 %v72, %v764
    %v766 = vand.u32 %v765, 4294901760
    %767 = vmatmul.f32.gmra.mxu0 %v766
    %v768 = vpop.f32.mrf.mxu0
    %v769 = vadd.f32 %v724, %v768
    %770 = vdwg.mxu0
    %v771 = vand.u32 %v108, 4294901760
    %v772 = vsub.f32 %v108, %v771
    %v773 = vand.u32 %v772, 4294901760
    %774 = vmatpush.msra.mxu0 %v773
    %v775 = vand.u32 %v107, 4294901760
    %v776 = vsub.f32 %v107, %v775
    %v777 = vand.u32 %v776, 4294901760
    %778 = vmatpush.msra.mxu0 %v777
    %v779 = vand.u32 %v106, 4294901760
    %v780 = vsub.f32 %v106, %v779
    %v781 = vand.u32 %v780, 4294901760
    %782 = vmatpush.msra.mxu0 %v781
    %v783 = vand.u32 %v105, 4294901760
    %v784 = vsub.f32 %v105, %v783
    %v785 = vand.u32 %v784, 4294901760
    %786 = vmatpush.msra.mxu0 %v785
    %v787 = vand.u32 %v104, 4294901760
    %v788 = vsub.f32 %v104, %v787
    %v789 = vand.u32 %v788, 4294901760
    %790 = vmatpush.msra.mxu0 %v789
    %v791 = vand.u32 %v103, 4294901760
    %v792 = vsub.f32 %v103, %v791
    %v793 = vand.u32 %v792, 4294901760
    %794 = vmatpush.msra.mxu0 %v793
    %v795 = vand.u32 %v102, 4294901760
    %v796 = vsub.f32 %v102, %v795
    %v797 = vand.u32 %v796, 4294901760
    %798 = vmatpush.msra.mxu0 %v797
    %v799 = vand.u32 %v101, 4294901760
    %v800 = vsub.f32 %v101, %v799
    %v801 = vand.u32 %v800, 4294901760
    %802 = vmatpush.msra.mxu0 %v801
    %v803 = vand.u32 %v100, 4294901760
    %v804 = vsub.f32 %v100, %v803
    %v805 = vand.u32 %v804, 4294901760
    %806 = vmatpush.msra.mxu0 %v805
    %v807 = vand.u32 %v99, 4294901760
    %v808 = vsub.f32 %v99, %v807
    %v809 = vand.u32 %v808, 4294901760
    %810 = vmatpush.msra.mxu0 %v809
    %v811 = vand.u32 %v98, 4294901760
    %v812 = vsub.f32 %v98, %v811
    %v813 = vand.u32 %v812, 4294901760
    %814 = vmatpush.msra.mxu0 %v813
    %v815 = vand.u32 %v97, 4294901760
    %v816 = vsub.f32 %v97, %v815
    %v817 = vand.u32 %v816, 4294901760
    %818 = vmatpush.msra.mxu0 %v817
    %v819 = vand.u32 %v96, 4294901760
    %v820 = vsub.f32 %v96, %v819
    %v821 = vand.u32 %v820, 4294901760
    %822 = vmatpush.msra.mxu0 %v821
    %v823 = vand.u32 %v95, 4294901760
    %v824 = vsub.f32 %v95, %v823
    %v825 = vand.u32 %v824, 4294901760
    %826 = vmatpush.msra.mxu0 %v825
    %v827 = vand.u32 %v94, 4294901760
    %v828 = vsub.f32 %v94, %v827
    %v829 = vand.u32 %v828, 4294901760
    %830 = vmatpush.msra.mxu0 %v829
    %v831 = vand.u32 %v93, 4294901760
    %v832 = vsub.f32 %v93, %v831
    %v833 = vand.u32 %v832, 4294901760
    %834 = vmatpush.msra.mxu0 %v833
    %v835 = vand.u32 %v68, 4294901760
    %836 = vmatmul.f32.gmra.mxu0 %v835
    %v837 = vpop.f32.mrf.mxu0
    %v838 = vadd.f32 %v763, %v837
    %v839 = vand.u32 %v72, 4294901760
    %840 = vmatmul.f32.gmra.mxu0 %v839
    %v841 = vpop.f32.mrf.mxu0
    %v842 = vadd.f32 %v769, %v841
    %843 = vdwg.mxu0
    %v844 = vand.u32 %v108, 4294901760
    %845 = vmatpush.msra.mxu0 %v844
    %v846 = vand.u32 %v107, 4294901760
    %847 = vmatpush.msra.mxu0 %v846
    %v848 = vand.u32 %v106, 4294901760
    %849 = vmatpush.msra.mxu0 %v848
    %v850 = vand.u32 %v105, 4294901760
    %851 = vmatpush.msra.mxu0 %v850
    %v852 = vand.u32 %v104, 4294901760
    %853 = vmatpush.msra.mxu0 %v852
    %v854 = vand.u32 %v103, 4294901760
    %855 = vmatpush.msra.mxu0 %v854
    %v856 = vand.u32 %v102, 4294901760
    %857 = vmatpush.msra.mxu0 %v856
    %v858 = vand.u32 %v101, 4294901760
    %859 = vmatpush.msra.mxu0 %v858
    %v860 = vand.u32 %v100, 4294901760
    %861 = vmatpush.msra.mxu0 %v860
    %v862 = vand.u32 %v99, 4294901760
    %863 = vmatpush.msra.mxu0 %v862
    %v864 = vand.u32 %v98, 4294901760
    %865 = vmatpush.msra.mxu0 %v864
    %v866 = vand.u32 %v97, 4294901760
    %867 = vmatpush.msra.mxu0 %v866
    %v868 = vand.u32 %v96, 4294901760
    %869 = vmatpush.msra.mxu0 %v868
    %v870 = vand.u32 %v95, 4294901760
    %871 = vmatpush.msra.mxu0 %v870
    %v872 = vand.u32 %v94, 4294901760
    %873 = vmatpush.msra.mxu0 %v872
    %v874 = vand.u32 %v93, 4294901760
    %875 = vmatpush.msra.mxu0 %v874
    %v876 = vand.u32 %v68, 4294901760
    %877 = vmatmul.f32.gmra.mxu0 %v876
    %v878 = vpop.f32.mrf.mxu0
    %v879 = vadd.f32 %v838, %v878
    %v880 = vand.u32 %v72, 4294901760
    %881 = vmatmul.f32.gmra.mxu0 %v880
    %v882 = vpop.f32.mrf.mxu0
    %v883 = vadd.f32 %v842, %v882
    %884 = vdwg.mxu0
    %v885 = vand.u32 %v124, 4294901760
    %886 = vmatpush.msra.mxu0 %v885
    %v887 = vand.u32 %v123, 4294901760
    %888 = vmatpush.msra.mxu0 %v887
    %v889 = vand.u32 %v122, 4294901760
    %890 = vmatpush.msra.mxu0 %v889
    %v891 = vand.u32 %v121, 4294901760
    %892 = vmatpush.msra.mxu0 %v891
    %v893 = vand.u32 %v120, 4294901760
    %894 = vmatpush.msra.mxu0 %v893
    %v895 = vand.u32 %v119, 4294901760
    %896 = vmatpush.msra.mxu0 %v895
    %v897 = vand.u32 %v118, 4294901760
    %898 = vmatpush.msra.mxu0 %v897
    %v899 = vand.u32 %v117, 4294901760
    %900 = vmatpush.msra.mxu0 %v899
    %v901 = vand.u32 %v116, 4294901760
    %902 = vmatpush.msra.mxu0 %v901
    %v903 = vand.u32 %v115, 4294901760
    %904 = vmatpush.msra.mxu0 %v903
    %v905 = vand.u32 %v114, 4294901760
    %906 = vmatpush.msra.mxu0 %v905
    %v907 = vand.u32 %v113, 4294901760
    %908 = vmatpush.msra.mxu0 %v907
    %v909 = vand.u32 %v112, 4294901760
    %910 = vmatpush.msra.mxu0 %v909
    %v911 = vand.u32 %v111, 4294901760
    %912 = vmatpush.msra.mxu0 %v911
    %v913 = vand.u32 %v110, 4294901760
    %914 = vmatpush.msra.mxu0 %v913
    %v915 = vand.u32 %v109, 4294901760
    %916 = vmatpush.msra.mxu0 %v915
    %v917 = vand.u32 %v69, 4294901760
    %v918 = vsub.f32 %v69, %v917
    %v919 = vand.u32 %v918, 4294901760
    %v920 = vsub.f32 %v918, %v919
    %v921 = vand.u32 %v920, 4294901760
    %922 = vmatmul.f32.gmra.mxu0 %v921
    %v923 = vpop.f32.mrf.mxu0
    %v924 = vadd.f32 %v879, %v923
    %v925 = vand.u32 %v73, 4294901760
    %v926 = vsub.f32 %v73, %v925
    %v927 = vand.u32 %v926, 4294901760
    %v928 = vsub.f32 %v926, %v927
    %v929 = vand.u32 %v928, 4294901760
    %930 = vmatmul.f32.gmra.mxu0 %v929
    %v931 = vpop.f32.mrf.mxu0
    %v932 = vadd.f32 %v883, %v931
    %933 = vdwg.mxu0
    %v934 = vand.u32 %v124, 4294901760
    %v935 = vsub.f32 %v124, %v934
    %v936 = vand.u32 %v935, 4294901760
    %v937 = vsub.f32 %v935, %v936
    %v938 = vand.u32 %v937, 4294901760
    %939 = vmatpush.msra.mxu0 %v938
    %v940 = vand.u32 %v123, 4294901760
    %v941 = vsub.f32 %v123, %v940
    %v942 = vand.u32 %v941, 4294901760
    %v943 = vsub.f32 %v941, %v942
    %v944 = vand.u32 %v943, 4294901760
    %945 = vmatpush.msra.mxu0 %v944
    %v946 = vand.u32 %v122, 4294901760
    %v947 = vsub.f32 %v122, %v946
    %v948 = vand.u32 %v947, 4294901760
    %v949 = vsub.f32 %v947, %v948
    %v950 = vand.u32 %v949, 4294901760
    %951 = vmatpush.msra.mxu0 %v950
    %v952 = vand.u32 %v121, 4294901760
    %v953 = vsub.f32 %v121, %v952
    %v954 = vand.u32 %v953, 4294901760
    %v955 = vsub.f32 %v953, %v954
    %v956 = vand.u32 %v955, 4294901760
    %957 = vmatpush.msra.mxu0 %v956
    %v958 = vand.u32 %v120, 4294901760
    %v959 = vsub.f32 %v120, %v958
    %v960 = vand.u32 %v959, 4294901760
    %v961 = vsub.f32 %v959, %v960
    %v962 = vand.u32 %v961, 4294901760
    %963 = vmatpush.msra.mxu0 %v962
    %v964 = vand.u32 %v119, 4294901760
    %v965 = vsub.f32 %v119, %v964
    %v966 = vand.u32 %v965, 4294901760
    %v967 = vsub.f32 %v965, %v966
    %v968 = vand.u32 %v967, 4294901760
    %969 = vmatpush.msra.mxu0 %v968
    %v970 = vand.u32 %v118, 4294901760
    %v971 = vsub.f32 %v118, %v970
    %v972 = vand.u32 %v971, 4294901760
    %v973 = vsub.f32 %v971, %v972
    %v974 = vand.u32 %v973, 4294901760
    %975 = vmatpush.msra.mxu0 %v974
    %v976 = vand.u32 %v117, 4294901760
    %v977 = vsub.f32 %v117, %v976
    %v978 = vand.u32 %v977, 4294901760
    %v979 = vsub.f32 %v977, %v978
    %v980 = vand.u32 %v979, 4294901760
    %981 = vmatpush.msra.mxu0 %v980
    %v982 = vand.u32 %v116, 4294901760
    %v983 = vsub.f32 %v116, %v982
    %v984 = vand.u32 %v983, 4294901760
    %v985 = vsub.f32 %v983, %v984
    %v986 = vand.u32 %v985, 4294901760
    %987 = vmatpush.msra.mxu0 %v986
    %v988 = vand.u32 %v115, 4294901760
    %v989 = vsub.f32 %v115, %v988
    %v990 = vand.u32 %v989, 4294901760
    %v991 = vsub.f32 %v989, %v990
    %v992 = vand.u32 %v991, 4294901760
    %993 = vmatpush.msra.mxu0 %v992
    %v994 = vand.u32 %v114, 4294901760
    %v995 = vsub.f32 %v114, %v994
    %v996 = vand.u32 %v995, 4294901760
    %v997 = vsub.f32 %v995, %v996
    %v998 = vand.u32 %v997, 4294901760
    %999 = vmatpush.msra.mxu0 %v998
    %v1000 = vand.u32 %v113, 4294901760
    %v1001 = vsub.f32 %v113, %v1000
    %v1002 = vand.u32 %v1001, 4294901760
    %v1003 = vsub.f32 %v1001, %v1002
    %v1004 = vand.u32 %v1003, 4294901760
    %1005 = vmatpush.msra.mxu0 %v1004
    %v1006 = vand.u32 %v112, 4294901760
    %v1007 = vsub.f32 %v112, %v1006
    %v1008 = vand.u32 %v1007, 4294901760
    %v1009 = vsub.f32 %v1007, %v1008
    %v1010 = vand.u32 %v1009, 4294901760
    %1011 = vmatpush.msra.mxu0 %v1010
    %v1012 = vand.u32 %v111, 4294901760
    %v1013 = vsub.f32 %v111, %v1012
    %v1014 = vand.u32 %v1013, 4294901760
    %v1015 = vsub.f32 %v1013, %v1014
    %v1016 = vand.u32 %v1015, 4294901760
    %1017 = vmatpush.msra.mxu0 %v1016
    %v1018 = vand.u32 %v110, 4294901760
    %v1019 = vsub.f32 %v110, %v1018
    %v1020 = vand.u32 %v1019, 4294901760
    %v1021 = vsub.f32 %v1019, %v1020
    %v1022 = vand.u32 %v1021, 4294901760
    %1023 = vmatpush.msra.mxu0 %v1022
    %v1024 = vand.u32 %v109, 4294901760
    %v1025 = vsub.f32 %v109, %v1024
    %v1026 = vand.u32 %v1025, 4294901760
    %v1027 = vsub.f32 %v1025, %v1026
    %v1028 = vand.u32 %v1027, 4294901760
    %1029 = vmatpush.msra.mxu0 %v1028
    %v1030 = vand.u32 %v69, 4294901760
    %1031 = vmatmul.f32.gmra.mxu0 %v1030
    %v1032 = vpop.f32.mrf.mxu0
    %v1033 = vadd.f32 %v924, %v1032
    %v1034 = vand.u32 %v73, 4294901760
    %1035 = vmatmul.f32.gmra.mxu0 %v1034
    %v1036 = vpop.f32.mrf.mxu0
    %v1037 = vadd.f32 %v932, %v1036
    %1038 = vdwg.mxu0
    %v1039 = vand.u32 %v124, 4294901760
    %v1040 = vsub.f32 %v124, %v1039
    %1041 = vmatpush.msra.mxu0 %v1040
    %v1042 = vand.u32 %v123, 4294901760
    %v1043 = vsub.f32 %v123, %v1042
    %1044 = vmatpush.msra.mxu0 %v1043
    %v1045 = vand.u32 %v122, 4294901760
    %v1046 = vsub.f32 %v122, %v1045
    %1047 = vmatpush.msra.mxu0 %v1046
    %v1048 = vand.u32 %v121, 4294901760
    %v1049 = vsub.f32 %v121, %v1048
    %1050 = vmatpush.msra.mxu0 %v1049
    %v1051 = vand.u32 %v120, 4294901760
    %v1052 = vsub.f32 %v120, %v1051
    %1053 = vmatpush.msra.mxu0 %v1052
    %v1054 = vand.u32 %v119, 4294901760
    %v1055 = vsub.f32 %v119, %v1054
    %1056 = vmatpush.msra.mxu0 %v1055
    %v1057 = vand.u32 %v118, 4294901760
    %v1058 = vsub.f32 %v118, %v1057
    %1059 = vmatpush.msra.mxu0 %v1058
    %v1060 = vand.u32 %v117, 4294901760
    %v1061 = vsub.f32 %v117, %v1060
    %1062 = vmatpush.msra.mxu0 %v1061
    %v1063 = vand.u32 %v116, 4294901760
    %v1064 = vsub.f32 %v116, %v1063
    %1065 = vmatpush.msra.mxu0 %v1064
    %v1066 = vand.u32 %v115, 4294901760
    %v1067 = vsub.f32 %v115, %v1066
    %1068 = vmatpush.msra.mxu0 %v1067
    %v1069 = vand.u32 %v114, 4294901760
    %v1070 = vsub.f32 %v114, %v1069
    %1071 = vmatpush.msra.mxu0 %v1070
    %v1072 = vand.u32 %v113, 4294901760
    %v1073 = vsub.f32 %v113, %v1072
    %1074 = vmatpush.msra.mxu0 %v1073
    %v1075 = vand.u32 %v112, 4294901760
    %v1076 = vsub.f32 %v112, %v1075
    %1077 = vmatpush.msra.mxu0 %v1076
    %v1078 = vand.u32 %v111, 4294901760
    %v1079 = vsub.f32 %v111, %v1078
    %1080 = vmatpush.msra.mxu0 %v1079
    %v1081 = vand.u32 %v110, 4294901760
    %v1082 = vsub.f32 %v110, %v1081
    %1083 = vmatpush.msra.mxu0 %v1082
    %v1084 = vand.u32 %v109, 4294901760
    %v1085 = vsub.f32 %v109, %v1084
    %1086 = vmatpush.msra.mxu0 %v1085
    %v1087 = vand.u32 %v69, 4294901760
    %v1088 = vsub.f32 %v69, %v1087
    %1089 = vmatmul.f32.gmra.mxu0 %v1088
    %v1090 = vpop.f32.mrf.mxu0
    %v1091 = vadd.f32 %v1033, %v1090
    %v1092 = vand.u32 %v73, 4294901760
    %v1093 = vsub.f32 %v73, %v1092
    %1094 = vmatmul.f32.gmra.mxu0 %v1093
    %v1095 = vpop.f32.mrf.mxu0
    %v1096 = vadd.f32 %v1037, %v1095
    %1097 = vdwg.mxu0
    %v1098 = vand.u32 %v124, 4294901760
    %1099 = vmatpush.msra.mxu0 %v1098
    %v1100 = vand.u32 %v123, 4294901760
    %1101 = vmatpush.msra.mxu0 %v1100
    %v1102 = vand.u32 %v122, 4294901760
    %1103 = vmatpush.msra.mxu0 %v1102
    %v1104 = vand.u32 %v121, 4294901760
    %1105 = vmatpush.msra.mxu0 %v1104
    %v1106 = vand.u32 %v120, 4294901760
    %1107 = vmatpush.msra.mxu0 %v1106
    %v1108 = vand.u32 %v119, 4294901760
    %1109 = vmatpush.msra.mxu0 %v1108
    %v1110 = vand.u32 %v118, 4294901760
    %1111 = vmatpush.msra.mxu0 %v1110
    %v1112 = vand.u32 %v117, 4294901760
    %1113 = vmatpush.msra.mxu0 %v1112
    %v1114 = vand.u32 %v116, 4294901760
    %1115 = vmatpush.msra.mxu0 %v1114
    %v1116 = vand.u32 %v115, 4294901760
    %1117 = vmatpush.msra.mxu0 %v1116
    %v1118 = vand.u32 %v114, 4294901760
    %1119 = vmatpush.msra.mxu0 %v1118
    %v1120 = vand.u32 %v113, 4294901760
    %1121 = vmatpush.msra.mxu0 %v1120
    %v1122 = vand.u32 %v112, 4294901760
    %1123 = vmatpush.msra.mxu0 %v1122
    %v1124 = vand.u32 %v111, 4294901760
    %1125 = vmatpush.msra.mxu0 %v1124
    %v1126 = vand.u32 %v110, 4294901760
    %1127 = vmatpush.msra.mxu0 %v1126
    %v1128 = vand.u32 %v109, 4294901760
    %1129 = vmatpush.msra.mxu0 %v1128
    %v1130 = vand.u32 %v69, 4294901760
    %v1131 = vsub.f32 %v69, %v1130
    %v1132 = vand.u32 %v1131, 4294901760
    %1133 = vmatmul.f32.gmra.mxu0 %v1132
    %v1134 = vpop.f32.mrf.mxu0
    %v1135 = vadd.f32 %v1091, %v1134
    %v1136 = vand.u32 %v73, 4294901760
    %v1137 = vsub.f32 %v73, %v1136
    %v1138 = vand.u32 %v1137, 4294901760
    %1139 = vmatmul.f32.gmra.mxu0 %v1138
    %v1140 = vpop.f32.mrf.mxu0
    %v1141 = vadd.f32 %v1096, %v1140
    %1142 = vdwg.mxu0
    %v1143 = vand.u32 %v124, 4294901760
    %v1144 = vsub.f32 %v124, %v1143
    %v1145 = vand.u32 %v1144, 4294901760
    %1146 = vmatpush.msra.mxu0 %v1145
    %v1147 = vand.u32 %v123, 4294901760
    %v1148 = vsub.f32 %v123, %v1147
    %v1149 = vand.u32 %v1148, 4294901760
    %1150 = vmatpush.msra.mxu0 %v1149
    %v1151 = vand.u32 %v122, 4294901760
    %v1152 = vsub.f32 %v122, %v1151
    %v1153 = vand.u32 %v1152, 4294901760
    %1154 = vmatpush.msra.mxu0 %v1153
    %v1155 = vand.u32 %v121, 4294901760
    %v1156 = vsub.f32 %v121, %v1155
    %v1157 = vand.u32 %v1156, 4294901760
    %1158 = vmatpush.msra.mxu0 %v1157
    %v1159 = vand.u32 %v120, 4294901760
    %v1160 = vsub.f32 %v120, %v1159
    %v1161 = vand.u32 %v1160, 4294901760
    %1162 = vmatpush.msra.mxu0 %v1161
    %v1163 = vand.u32 %v119, 4294901760
    %v1164 = vsub.f32 %v119, %v1163
    %v1165 = vand.u32 %v1164, 4294901760
    %1166 = vmatpush.msra.mxu0 %v1165
    %v1167 = vand.u32 %v118, 4294901760
    %v1168 = vsub.f32 %v118, %v1167
    %v1169 = vand.u32 %v1168, 4294901760
    %1170 = vmatpush.msra.mxu0 %v1169
    %v1171 = vand.u32 %v117, 4294901760
    %v1172 = vsub.f32 %v117, %v1171
    %v1173 = vand.u32 %v1172, 4294901760
    %1174 = vmatpush.msra.mxu0 %v1173
    %v1175 = vand.u32 %v116, 4294901760
    %v1176 = vsub.f32 %v116, %v1175
    %v1177 = vand.u32 %v1176, 4294901760
    %1178 = vmatpush.msra.mxu0 %v1177
    %v1179 = vand.u32 %v115, 4294901760
    %v1180 = vsub.f32 %v115, %v1179
    %v1181 = vand.u32 %v1180, 4294901760
    %1182 = vmatpush.msra.mxu0 %v1181
    %v1183 = vand.u32 %v114, 4294901760
    %v1184 = vsub.f32 %v114, %v1183
    %v1185 = vand.u32 %v1184, 4294901760
    %1186 = vmatpush.msra.mxu0 %v1185
    %v1187 = vand.u32 %v113, 4294901760
    %v1188 = vsub.f32 %v113, %v1187
    %v1189 = vand.u32 %v1188, 4294901760
    %1190 = vmatpush.msra.mxu0 %v1189
    %v1191 = vand.u32 %v112, 4294901760
    %v1192 = vsub.f32 %v112, %v1191
    %v1193 = vand.u32 %v1192, 4294901760
    %1194 = vmatpush.msra.mxu0 %v1193
    %v1195 = vand.u32 %v111, 4294901760
    %v1196 = vsub.f32 %v111, %v1195
    %v1197 = vand.u32 %v1196, 4294901760
    %1198 = vmatpush.msra.mxu0 %v1197
    %v1199 = vand.u32 %v110, 4294901760
    %v1200 = vsub.f32 %v110, %v1199
    %v1201 = vand.u32 %v1200, 4294901760
    %1202 = vmatpush.msra.mxu0 %v1201
    %v1203 = vand.u32 %v109, 4294901760
    %v1204 = vsub.f32 %v109, %v1203
    %v1205 = vand.u32 %v1204, 4294901760
    %1206 = vmatpush.msra.mxu0 %v1205
    %v1207 = vand.u32 %v69, 4294901760
    %1208 = vmatmul.f32.gmra.mxu0 %v1207
    %v1209 = vpop.f32.mrf.mxu0
    %v1210 = vadd.f32 %v1135, %v1209
    %v1211 = vand.u32 %v73, 4294901760
    %1212 = vmatmul.f32.gmra.mxu0 %v1211
    %v1213 = vpop.f32.mrf.mxu0
    %v1214 = vadd.f32 %v1141, %v1213
    %1215 = vdwg.mxu0
    %v1216 = vand.u32 %v124, 4294901760
    %1217 = vmatpush.msra.mxu0 %v1216
    %v1218 = vand.u32 %v123, 4294901760
    %1219 = vmatpush.msra.mxu0 %v1218
    %v1220 = vand.u32 %v122, 4294901760
    %1221 = vmatpush.msra.mxu0 %v1220
    %v1222 = vand.u32 %v121, 4294901760
    %1223 = vmatpush.msra.mxu0 %v1222
    %v1224 = vand.u32 %v120, 4294901760
    %1225 = vmatpush.msra.mxu0 %v1224
    %v1226 = vand.u32 %v119, 4294901760
    %1227 = vmatpush.msra.mxu0 %v1226
    %v1228 = vand.u32 %v118, 4294901760
    %1229 = vmatpush.msra.mxu0 %v1228
    %v1230 = vand.u32 %v117, 4294901760
    %1231 = vmatpush.msra.mxu0 %v1230
    %v1232 = vand.u32 %v116, 4294901760
    %1233 = vmatpush.msra.mxu0 %v1232
    %v1234 = vand.u32 %v115, 4294901760
    %1235 = vmatpush.msra.mxu0 %v1234
    %v1236 = vand.u32 %v114, 4294901760
    %1237 = vmatpush.msra.mxu0 %v1236
    %v1238 = vand.u32 %v113, 4294901760
    %1239 = vmatpush.msra.mxu0 %v1238
    %v1240 = vand.u32 %v112, 4294901760
    %1241 = vmatpush.msra.mxu0 %v1240
    %v1242 = vand.u32 %v111, 4294901760
    %1243 = vmatpush.msra.mxu0 %v1242
    %v1244 = vand.u32 %v110, 4294901760
    %1245 = vmatpush.msra.mxu0 %v1244
    %v1246 = vand.u32 %v109, 4294901760
    %1247 = vmatpush.msra.mxu0 %v1246
    %v1248 = vand.u32 %v69, 4294901760
    %1249 = vmatmul.f32.gmra.mxu0 %v1248
    %v1250 = vpop.f32.mrf.mxu0
    %v1251 = vadd.f32 %v1210, %v1250
    %v1252 = vand.u32 %v73, 4294901760
    %1253 = vmatmul.f32.gmra.mxu0 %v1252
    %v1254 = vpop.f32.mrf.mxu0
    %v1255 = vadd.f32 %v1214, %v1254
    %1256 = vdwg.mxu0
    %v1257 = vand.u32 %v140, 4294901760
    %1258 = vmatpush.msra.mxu0 %v1257
    %v1259 = vand.u32 %v139, 4294901760
    %1260 = vmatpush.msra.mxu0 %v1259
    %v1261 = vand.u32 %v138, 4294901760
    %1262 = vmatpush.msra.mxu0 %v1261
    %v1263 = vand.u32 %v137, 4294901760
    %1264 = vmatpush.msra.mxu0 %v1263
    %v1265 = vand.u32 %v136, 4294901760
    %1266 = vmatpush.msra.mxu0 %v1265
    %v1267 = vand.u32 %v135, 4294901760
    %1268 = vmatpush.msra.mxu0 %v1267
    %v1269 = vand.u32 %v134, 4294901760
    %1270 = vmatpush.msra.mxu0 %v1269
    %v1271 = vand.u32 %v133, 4294901760
    %1272 = vmatpush.msra.mxu0 %v1271
    %v1273 = vand.u32 %v132, 4294901760
    %1274 = vmatpush.msra.mxu0 %v1273
    %v1275 = vand.u32 %v131, 4294901760
    %1276 = vmatpush.msra.mxu0 %v1275
    %v1277 = vand.u32 %v130, 4294901760
    %1278 = vmatpush.msra.mxu0 %v1277
    %v1279 = vand.u32 %v129, 4294901760
    %1280 = vmatpush.msra.mxu0 %v1279
    %v1281 = vand.u32 %v128, 4294901760
    %1282 = vmatpush.msra.mxu0 %v1281
    %v1283 = vand.u32 %v127, 4294901760
    %1284 = vmatpush.msra.mxu0 %v1283
    %v1285 = vand.u32 %v126, 4294901760
    %1286 = vmatpush.msra.mxu0 %v1285
    %v1287 = vand.u32 %v125, 4294901760
    %1288 = vmatpush.msra.mxu0 %v1287
    %v1289 = vand.u32 %v70, 4294901760
    %v1290 = vsub.f32 %v70, %v1289
    %v1291 = vand.u32 %v1290, 4294901760
    %v1292 = vsub.f32 %v1290, %v1291
    %v1293 = vand.u32 %v1292, 4294901760
    %1294 = vmatmul.f32.gmra.mxu0 %v1293
    %v1295 = vpop.f32.mrf.mxu0
    %v1296 = vadd.f32 %v1251, %v1295
    %v1297 = vand.u32 %v74, 4294901760
    %v1298 = vsub.f32 %v74, %v1297
    %v1299 = vand.u32 %v1298, 4294901760
    %v1300 = vsub.f32 %v1298, %v1299
    %v1301 = vand.u32 %v1300, 4294901760
    %1302 = vmatmul.f32.gmra.mxu0 %v1301
    %v1303 = vpop.f32.mrf.mxu0
    %v1304 = vadd.f32 %v1255, %v1303
    %1305 = vdwg.mxu0
    %v1306 = vand.u32 %v140, 4294901760
    %v1307 = vsub.f32 %v140, %v1306
    %v1308 = vand.u32 %v1307, 4294901760
    %v1309 = vsub.f32 %v1307, %v1308
    %v1310 = vand.u32 %v1309, 4294901760
    %1311 = vmatpush.msra.mxu0 %v1310
    %v1312 = vand.u32 %v139, 4294901760
    %v1313 = vsub.f32 %v139, %v1312
    %v1314 = vand.u32 %v1313, 4294901760
    %v1315 = vsub.f32 %v1313, %v1314
    %v1316 = vand.u32 %v1315, 4294901760
    %1317 = vmatpush.msra.mxu0 %v1316
    %v1318 = vand.u32 %v138, 4294901760
    %v1319 = vsub.f32 %v138, %v1318
    %v1320 = vand.u32 %v1319, 4294901760
    %v1321 = vsub.f32 %v1319, %v1320
    %v1322 = vand.u32 %v1321, 4294901760
    %1323 = vmatpush.msra.mxu0 %v1322
    %v1324 = vand.u32 %v137, 4294901760
    %v1325 = vsub.f32 %v137, %v1324
    %v1326 = vand.u32 %v1325, 4294901760
    %v1327 = vsub.f32 %v1325, %v1326
    %v1328 = vand.u32 %v1327, 4294901760
    %1329 = vmatpush.msra.mxu0 %v1328
    %v1330 = vand.u32 %v136, 4294901760
    %v1331 = vsub.f32 %v136, %v1330
    %v1332 = vand.u32 %v1331, 4294901760
    %v1333 = vsub.f32 %v1331, %v1332
    %v1334 = vand.u32 %v1333, 4294901760
    %1335 = vmatpush.msra.mxu0 %v1334
    %v1336 = vand.u32 %v135, 4294901760
    %v1337 = vsub.f32 %v135, %v1336
    %v1338 = vand.u32 %v1337, 4294901760
    %v1339 = vsub.f32 %v1337, %v1338
    %v1340 = vand.u32 %v1339, 4294901760
    %1341 = vmatpush.msra.mxu0 %v1340
    %v1342 = vand.u32 %v134, 4294901760
    %v1343 = vsub.f32 %v134, %v1342
    %v1344 = vand.u32 %v1343, 4294901760
    %v1345 = vsub.f32 %v1343, %v1344
    %v1346 = vand.u32 %v1345, 4294901760
    %1347 = vmatpush.msra.mxu0 %v1346
    %v1348 = vand.u32 %v133, 4294901760
    %v1349 = vsub.f32 %v133, %v1348
    %v1350 = vand.u32 %v1349, 4294901760
    %v1351 = vsub.f32 %v1349, %v1350
    %v1352 = vand.u32 %v1351, 4294901760
    %1353 = vmatpush.msra.mxu0 %v1352
    %v1354 = vand.u32 %v132, 4294901760
    %v1355 = vsub.f32 %v132, %v1354
    %v1356 = vand.u32 %v1355, 4294901760
    %v1357 = vsub.f32 %v1355, %v1356
    %v1358 = vand.u32 %v1357, 4294901760
    %1359 = vmatpush.msra.mxu0 %v1358
    %v1360 = vand.u32 %v131, 4294901760
    %v1361 = vsub.f32 %v131, %v1360
    %v1362 = vand.u32 %v1361, 4294901760
    %v1363 = vsub.f32 %v1361, %v1362
    %v1364 = vand.u32 %v1363, 4294901760
    %1365 = vmatpush.msra.mxu0 %v1364
    %v1366 = vand.u32 %v130, 4294901760
    %v1367 = vsub.f32 %v130, %v1366
    %v1368 = vand.u32 %v1367, 4294901760
    %v1369 = vsub.f32 %v1367, %v1368
    %v1370 = vand.u32 %v1369, 4294901760
    %1371 = vmatpush.msra.mxu0 %v1370
    %v1372 = vand.u32 %v129, 4294901760
    %v1373 = vsub.f32 %v129, %v1372
    %v1374 = vand.u32 %v1373, 4294901760
    %v1375 = vsub.f32 %v1373, %v1374
    %v1376 = vand.u32 %v1375, 4294901760
    %1377 = vmatpush.msra.mxu0 %v1376
    %v1378 = vand.u32 %v128, 4294901760
    %v1379 = vsub.f32 %v128, %v1378
    %v1380 = vand.u32 %v1379, 4294901760
    %v1381 = vsub.f32 %v1379, %v1380
    %v1382 = vand.u32 %v1381, 4294901760
    %1383 = vmatpush.msra.mxu0 %v1382
    %v1384 = vand.u32 %v127, 4294901760
    %v1385 = vsub.f32 %v127, %v1384
    %v1386 = vand.u32 %v1385, 4294901760
    %v1387 = vsub.f32 %v1385, %v1386
    %v1388 = vand.u32 %v1387, 4294901760
    %1389 = vmatpush.msra.mxu0 %v1388
    %v1390 = vand.u32 %v126, 4294901760
    %v1391 = vsub.f32 %v126, %v1390
    %v1392 = vand.u32 %v1391, 4294901760
    %v1393 = vsub.f32 %v1391, %v1392
    %v1394 = vand.u32 %v1393, 4294901760
    %1395 = vmatpush.msra.mxu0 %v1394
    %v1396 = vand.u32 %v125, 4294901760
    %v1397 = vsub.f32 %v125, %v1396
    %v1398 = vand.u32 %v1397, 4294901760
    %v1399 = vsub.f32 %v1397, %v1398
    %v1400 = vand.u32 %v1399, 4294901760
    %1401 = vmatpush.msra.mxu0 %v1400
    %v1402 = vand.u32 %v70, 4294901760
    %1403 = vmatmul.f32.gmra.mxu0 %v1402
    %v1404 = vpop.f32.mrf.mxu0
    %v1405 = vadd.f32 %v1296, %v1404
    %v1406 = vand.u32 %v74, 4294901760
    %1407 = vmatmul.f32.gmra.mxu0 %v1406
    %v1408 = vpop.f32.mrf.mxu0
    %v1409 = vadd.f32 %v1304, %v1408
    %1410 = vdwg.mxu0
    %v1411 = vand.u32 %v140, 4294901760
    %v1412 = vsub.f32 %v140, %v1411
    %1413 = vmatpush.msra.mxu0 %v1412
    %v1414 = vand.u32 %v139, 4294901760
    %v1415 = vsub.f32 %v139, %v1414
    %1416 = vmatpush.msra.mxu0 %v1415
    %v1417 = vand.u32 %v138, 4294901760
    %v1418 = vsub.f32 %v138, %v1417
    %1419 = vmatpush.msra.mxu0 %v1418
    %v1420 = vand.u32 %v137, 4294901760
    %v1421 = vsub.f32 %v137, %v1420
    %1422 = vmatpush.msra.mxu0 %v1421
    %v1423 = vand.u32 %v136, 4294901760
    %v1424 = vsub.f32 %v136, %v1423
    %1425 = vmatpush.msra.mxu0 %v1424
    %v1426 = vand.u32 %v135, 4294901760
    %v1427 = vsub.f32 %v135, %v1426
    %1428 = vmatpush.msra.mxu0 %v1427
    %v1429 = vand.u32 %v134, 4294901760
    %v1430 = vsub.f32 %v134, %v1429
    %1431 = vmatpush.msra.mxu0 %v1430
    %v1432 = vand.u32 %v133, 4294901760
    %v1433 = vsub.f32 %v133, %v1432
    %1434 = vmatpush.msra.mxu0 %v1433
    %v1435 = vand.u32 %v132, 4294901760
    %v1436 = vsub.f32 %v132, %v1435
    %1437 = vmatpush.msra.mxu0 %v1436
    %v1438 = vand.u32 %v131, 4294901760
    %v1439 = vsub.f32 %v131, %v1438
    %1440 = vmatpush.msra.mxu0 %v1439
    %v1441 = vand.u32 %v130, 4294901760
    %v1442 = vsub.f32 %v130, %v1441
    %1443 = vmatpush.msra.mxu0 %v1442
    %v1444 = vand.u32 %v129, 4294901760
    %v1445 = vsub.f32 %v129, %v1444
    %1446 = vmatpush.msra.mxu0 %v1445
    %v1447 = vand.u32 %v128, 4294901760
    %v1448 = vsub.f32 %v128, %v1447
    %1449 = vmatpush.msra.mxu0 %v1448
    %v1450 = vand.u32 %v127, 4294901760
    %v1451 = vsub.f32 %v127, %v1450
    %1452 = vmatpush.msra.mxu0 %v1451
    %v1453 = vand.u32 %v126, 4294901760
    %v1454 = vsub.f32 %v126, %v1453
    %1455 = vmatpush.msra.mxu0 %v1454
    %v1456 = vand.u32 %v125, 4294901760
    %v1457 = vsub.f32 %v125, %v1456
    %1458 = vmatpush.msra.mxu0 %v1457
    %v1459 = vand.u32 %v70, 4294901760
    %v1460 = vsub.f32 %v70, %v1459
    %1461 = vmatmul.f32.gmra.mxu0 %v1460
    %v1462 = vpop.f32.mrf.mxu0
    %v1463 = vadd.f32 %v1405, %v1462
    %v1464 = vand.u32 %v74, 4294901760
    %v1465 = vsub.f32 %v74, %v1464
    %1466 = vmatmul.f32.gmra.mxu0 %v1465
    %v1467 = vpop.f32.mrf.mxu0
    %v1468 = vadd.f32 %v1409, %v1467
    %1469 = vdwg.mxu0
    %v1470 = vand.u32 %v140, 4294901760
    %1471 = vmatpush.msra.mxu0 %v1470
    %v1472 = vand.u32 %v139, 4294901760
    %1473 = vmatpush.msra.mxu0 %v1472
    %v1474 = vand.u32 %v138, 4294901760
    %1475 = vmatpush.msra.mxu0 %v1474
    %v1476 = vand.u32 %v137, 4294901760
    %1477 = vmatpush.msra.mxu0 %v1476
    %v1478 = vand.u32 %v136, 4294901760
    %1479 = vmatpush.msra.mxu0 %v1478
    %v1480 = vand.u32 %v135, 4294901760
    %1481 = vmatpush.msra.mxu0 %v1480
    %v1482 = vand.u32 %v134, 4294901760
    %1483 = vmatpush.msra.mxu0 %v1482
    %v1484 = vand.u32 %v133, 4294901760
    %1485 = vmatpush.msra.mxu0 %v1484
    %v1486 = vand.u32 %v132, 4294901760
    %1487 = vmatpush.msra.mxu0 %v1486
    %v1488 = vand.u32 %v131, 4294901760
    %1489 = vmatpush.msra.mxu0 %v1488
    %v1490 = vand.u32 %v130, 4294901760
    %1491 = vmatpush.msra.mxu0 %v1490
    %v1492 = vand.u32 %v129, 4294901760
    %1493 = vmatpush.msra.mxu0 %v1492
    %v1494 = vand.u32 %v128, 4294901760
    %1495 = vmatpush.msra.mxu0 %v1494
    %v1496 = vand.u32 %v127, 4294901760
    %1497 = vmatpush.msra.mxu0 %v1496
    %v1498 = vand.u32 %v126, 4294901760
    %1499 = vmatpush.msra.mxu0 %v1498
    %v1500 = vand.u32 %v125, 4294901760
    %1501 = vmatpush.msra.mxu0 %v1500
    %v1502 = vand.u32 %v70, 4294901760
    %v1503 = vsub.f32 %v70, %v1502
    %v1504 = vand.u32 %v1503, 4294901760
    %1505 = vmatmul.f32.gmra.mxu0 %v1504
    %v1506 = vpop.f32.mrf.mxu0
    %v1507 = vadd.f32 %v1463, %v1506
    %v1508 = vand.u32 %v74, 4294901760
    %v1509 = vsub.f32 %v74, %v1508
    %v1510 = vand.u32 %v1509, 4294901760
    %1511 = vmatmul.f32.gmra.mxu0 %v1510
    %v1512 = vpop.f32.mrf.mxu0
    %v1513 = vadd.f32 %v1468, %v1512
    %1514 = vdwg.mxu0
    %v1515 = vand.u32 %v140, 4294901760
    %v1516 = vsub.f32 %v140, %v1515
    %v1517 = vand.u32 %v1516, 4294901760
    %1518 = vmatpush.msra.mxu0 %v1517
    %v1519 = vand.u32 %v139, 4294901760
    %v1520 = vsub.f32 %v139, %v1519
    %v1521 = vand.u32 %v1520, 4294901760
    %1522 = vmatpush.msra.mxu0 %v1521
    %v1523 = vand.u32 %v138, 4294901760
    %v1524 = vsub.f32 %v138, %v1523
    %v1525 = vand.u32 %v1524, 4294901760
    %1526 = vmatpush.msra.mxu0 %v1525
    %v1527 = vand.u32 %v137, 4294901760
    %v1528 = vsub.f32 %v137, %v1527
    %v1529 = vand.u32 %v1528, 4294901760
    %1530 = vmatpush.msra.mxu0 %v1529
    %v1531 = vand.u32 %v136, 4294901760
    %v1532 = vsub.f32 %v136, %v1531
    %v1533 = vand.u32 %v1532, 4294901760
    %1534 = vmatpush.msra.mxu0 %v1533
    %v1535 = vand.u32 %v135, 4294901760
    %v1536 = vsub.f32 %v135, %v1535
    %v1537 = vand.u32 %v1536, 4294901760
    %1538 = vmatpush.msra.mxu0 %v1537
    %v1539 = vand.u32 %v134, 4294901760
    %v1540 = vsub.f32 %v134, %v1539
    %v1541 = vand.u32 %v1540, 4294901760
    %1542 = vmatpush.msra.mxu0 %v1541
    %v1543 = vand.u32 %v133, 4294901760
    %v1544 = vsub.f32 %v133, %v1543
    %v1545 = vand.u32 %v1544, 4294901760
    %1546 = vmatpush.msra.mxu0 %v1545
    %v1547 = vand.u32 %v132, 4294901760
    %v1548 = vsub.f32 %v132, %v1547
    %v1549 = vand.u32 %v1548, 4294901760
    %1550 = vmatpush.msra.mxu0 %v1549
    %v1551 = vand.u32 %v131, 4294901760
    %v1552 = vsub.f32 %v131, %v1551
    %v1553 = vand.u32 %v1552, 4294901760
    %1554 = vmatpush.msra.mxu0 %v1553
    %v1555 = vand.u32 %v130, 4294901760
    %v1556 = vsub.f32 %v130, %v1555
    %v1557 = vand.u32 %v1556, 4294901760
    %1558 = vmatpush.msra.mxu0 %v1557
    %v1559 = vand.u32 %v129, 4294901760
    %v1560 = vsub.f32 %v129, %v1559
    %v1561 = vand.u32 %v1560, 4294901760
    %1562 = vmatpush.msra.mxu0 %v1561
    %v1563 = vand.u32 %v128, 4294901760
    %v1564 = vsub.f32 %v128, %v1563
    %v1565 = vand.u32 %v1564, 4294901760
    %1566 = vmatpush.msra.mxu0 %v1565
    %v1567 = vand.u32 %v127, 4294901760
    %v1568 = vsub.f32 %v127, %v1567
    %v1569 = vand.u32 %v1568, 4294901760
    %1570 = vmatpush.msra.mxu0 %v1569
    %v1571 = vand.u32 %v126, 4294901760
    %v1572 = vsub.f32 %v126, %v1571
    %v1573 = vand.u32 %v1572, 4294901760
    %1574 = vmatpush.msra.mxu0 %v1573
    %v1575 = vand.u32 %v125, 4294901760
    %v1576 = vsub.f32 %v125, %v1575
    %v1577 = vand.u32 %v1576, 4294901760
    %1578 = vmatpush.msra.mxu0 %v1577
    %v1579 = vand.u32 %v70, 4294901760
    %1580 = vmatmul.f32.gmra.mxu0 %v1579
    %v1581 = vpop.f32.mrf.mxu0
    %v1582 = vadd.f32 %v1507, %v1581
    %v1583 = vand.u32 %v74, 4294901760
    %1584 = vmatmul.f32.gmra.mxu0 %v1583
    %v1585 = vpop.f32.mrf.mxu0
    %v1586 = vadd.f32 %v1513, %v1585
    %1587 = vdwg.mxu0
    %v1588 = vand.u32 %v140, 4294901760
    %1589 = vmatpush.msra.mxu0 %v1588
    %v1590 = vand.u32 %v139, 4294901760
    %1591 = vmatpush.msra.mxu0 %v1590
    %v1592 = vand.u32 %v138, 4294901760
    %1593 = vmatpush.msra.mxu0 %v1592
    %v1594 = vand.u32 %v137, 4294901760
    %1595 = vmatpush.msra.mxu0 %v1594
    %v1596 = vand.u32 %v136, 4294901760
    %1597 = vmatpush.msra.mxu0 %v1596
    %v1598 = vand.u32 %v135, 4294901760
    %1599 = vmatpush.msra.mxu0 %v1598
    %v1600 = vand.u32 %v134, 4294901760
    %1601 = vmatpush.msra.mxu0 %v1600
    %v1602 = vand.u32 %v133, 4294901760
    %1603 = vmatpush.msra.mxu0 %v1602
    %v1604 = vand.u32 %v132, 4294901760
    %1605 = vmatpush.msra.mxu0 %v1604
    %v1606 = vand.u32 %v131, 4294901760
    %1607 = vmatpush.msra.mxu0 %v1606
    %v1608 = vand.u32 %v130, 4294901760
    %1609 = vmatpush.msra.mxu0 %v1608
    %v1610 = vand.u32 %v129, 4294901760
    %1611 = vmatpush.msra.mxu0 %v1610
    %v1612 = vand.u32 %v128, 4294901760
    %1613 = vmatpush.msra.mxu0 %v1612
    %v1614 = vand.u32 %v127, 4294901760
    %1615 = vmatpush.msra.mxu0 %v1614
    %v1616 = vand.u32 %v126, 4294901760
    %1617 = vmatpush.msra.mxu0 %v1616
    %v1618 = vand.u32 %v125, 4294901760
    %1619 = vmatpush.msra.mxu0 %v1618
    %v1620 = vand.u32 %v70, 4294901760
    %1621 = vmatmul.f32.gmra.mxu0 %v1620
    %v1622 = vpop.f32.mrf.mxu0
    %v1623 = vadd.f32 %v1582, %v1622
    %v1624 = vand.u32 %v74, 4294901760
    %1625 = vmatmul.f32.gmra.mxu0 %v1624
    %v1626 = vpop.f32.mrf.mxu0
    %v1627 = vadd.f32 %v1586, %v1626
    %1628 = vdwg.mxu0
    %v1629 = vadd.f32 %v75, %v1623
    %v1630 = vadd.f32 %v76, %v1627
    %1631 = vst [vmem:[#allocation2] sm:$0xff] %v1629
    %1632 = vst [vmem:[#allocation2 + $0x8] sm:$0xff] %v1630
    // Predicated region
    $region18: #{tpu_custom_call.1} parent=1 // pred_check
      %p1633 = pneg %p28
    $region19: #{tpu_custom_call.1} parent=1 // pred_check_branch
      %1635 = sbr.rel (%p1633) target = $region21
    $region20: #{tpu_custom_call.1} parent=1 // pred_region
      %v1636 = vld [vmem:[#allocation2] sm:$0xff]
      %v1637 = vld [vmem:[#allocation2 + $0x8] sm:$0xff]
      %1638 = vst [vmem:[#allocation6] sm:$0xff] %v1636
      %1639 = vst [vmem:[#allocation6 + $0x8] sm:$0xff] %v1637
    $region21: #{tpu_custom_call.1} parent=1 // pred_fallthru
      _
    // Predicated region
    $region22: #{tpu_custom_call.1} parent=1 // pred_check
      _
    $region23: #{tpu_custom_call.1} parent=1 // pred_check_branch
      %1641 = sbr.rel (0) target = $region25
    $region24: #{tpu_custom_call.1} parent=1 // pred_region
      %1643 = vsyncadd [#allocation5], 0
      %s1644 = sshll.u32 [#allocation6], 4
      %s1645 = int_to_ptr.vmem [resolvable:$true] %s1644
      %s1646 = sshll.u32 %s2, 4
      %s1647 = int_to_ptr.hbm [resolvable:$true] %s1646
      %1652 = dma.vmem_to_hbm [thread:$0]  %s1645, 256, %s1647, [#allocation5], 128, 128, 8
    $region25: #{tpu_custom_call.1} parent=1 // pred_fallthru
      _
    // Predicated region
    $region26: #{tpu_custom_call.1} parent=1 // pred_check
      _
    $region27: #{tpu_custom_call.1} parent=1 // pred_check_branch
      %1654 = sbr.rel (0) target = $region29
    $region28: #{tpu_custom_call.1} parent=1 // pred_region
      %1656 = dma.done [#allocation5], 256
    $region29: #{tpu_custom_call.1} parent=1 // pred_fallthru
      _
    %1657 = vsyncpa [#allocation4], 1
    %1658 = vsyncpa [#allocation5], 1

</llo_original>
